<compile_context>
chip_gen: v5e
topology: v5e:2x2
jax: 0.10.0
libtpu: 0.0.40
codegen_flags: <defaults>
</compile_context>

<pallas_src>
import jax
import jax.numpy as jnp
from jax import lax
from jax.experimental import pallas as pl
from jax.experimental.pallas import tpu as pltpu

# ---------------- configuration (module defaults) ----------------
IN_FEATS = 7
OUT_FEATS = 128
H0, H1, H2 = 32, 32, 32          # hidden_dims
K = 2                            # Laplacian polynomial order
P = 3                            # number of statistical moments (capsules)
EPS = 1e-5                       # nn.LayerNorm default eps
NEG_SLOPE = 0.01                 # nn.LeakyReLU default

HP = H2 * P                      # 96  = hidden * p  (capsule feature width)
SLOT = 128                       # lane-aligned slot width
FPAD = ((IN_FEATS + 7) // 8) * 8 # 8   (node features padded to an aligned K)

# capsule slab (256 lanes) row offsets
_CAP_W1 = 0                      # primary caps combined weight   (96, 256)
_CAP_W2 = HP                     # secondary caps combined weight (384, 256)
_CAP_VEC = HP + P * SLOT         # 480: 8 vector rows (biases / LN params)
_CAP_ROWS = _CAP_VEC + 8         # 488

# context/linear slab (128 lanes) row offsets
_CTX_LIN = 0                     # linear1 weight rows            (8, :32)
_CTX_W1 = FPAD                   # context_l1 [agent|peers] rows  (256, :96)
_CTX_W2 = FPAD + 2 * SLOT        # 264: context_l2 weight         (96, 128)
_CTX_VEC = _CTX_W2 + HP          # 360: 8 vector rows
_CTX_ROWS = _CTX_VEC + 8         # 368


def _round_up(x, m):
    return ((x + m - 1) // m) * m


def _cdiv(a, b):
    return -(-a // b)


# ---------------- in-kernel helpers (traced into the Pallas body) -----------
def _leaky_relu(x):
    return jnp.where(x > 0, x, NEG_SLOPE * x)


def _layernorm(x, g, b):
    # one pass: independent sum(x) / sum(x*x) reductions, var = E[x^2] - mu^2
    mu = jnp.mean(x, axis=-1, keepdims=True)
    ex2 = jnp.mean(x * x, axis=-1, keepdims=True)
    var = jnp.maximum(ex2 - mu * mu, 0.0)
    return (x - mu) * lax.rsqrt(var + EPS) * g + b


def _lap_apply(Lb, t3):
    """out[b,i,:] = sum_j Lb[b,i,j] * t3[b,j,:] — VPU unroll for small graphs."""
    N = t3.shape[1]
    if N <= 32:
        out = Lb[:, :, 0:1] * t3[:, 0:1, :]
        for j in range(1, N):
            out = out + Lb[:, :, j:j + 1] * t3[:, j:j + 1, :]
        return out
    # TODO(synk): for large graphs build a block-diagonal (TB*N, TB*N) Laplacian
    #   and use one dense MXU matmul sized to the 256-wide MXU instead.
    return jnp.einsum('bij,bjd->bid', Lb, t3, preferred_element_type=jnp.float32)


# ---------------- the Pallas kernel (TB graphs per grid step) ---------------
def context_encoder_kernel(x_ref, L_ref, aidx_ref, time_ref,
                           wcap_ref, wctx_ref, out_ref):
    TB, N, Fp = x_ref.shape
    M = TB * N
    f32 = jnp.float32

    # ---- unpack parameter slabs (static, 8-aligned sublane offsets) ----
    w_lin1 = wctx_ref[_CTX_LIN:_CTX_LIN + FPAD, :][:, 0:H0]          # (8, 32)
    w_ctx1 = wctx_ref[_CTX_W1:_CTX_W1 + 2 * SLOT, :][:, 0:HP]        # (256, 96)
    w_ctx2 = wctx_ref[_CTX_W2:_CTX_W2 + HP, :]                       # (96, 128)
    cv = wctx_ref[_CTX_VEC:_CTX_VEC + 8, :]                          # (8, 128)
    b_lin1, g_ln1, b_ln1 = cv[0:1, 0:H0], cv[1:2, 0:H0], cv[2:3, 0:H0]
    w_ctx_t, b_ctx1 = cv[3:4, 0:HP], cv[4:5, 0:HP]
    b_ctx2, g_ln2, b_ln2 = cv[5:6, :], cv[6:7, :], cv[7:8, :]

    wcap1 = wcap_ref[_CAP_W1:_CAP_W1 + HP, :]                        # (96, 256)
    wcap2 = wcap_ref[_CAP_W2:_CAP_W2 + P * SLOT, :]                  # (384, 256)
    pv = wcap_ref[_CAP_VEC:_CAP_VEC + 8, :]                          # (8, 256)
    b_c1, g_lnc1, b_lnc1 = pv[0:1, 0:HP], pv[1:2, 0:HP], pv[2:3, 0:HP]
    b_c2, g_lnc2, b_lnc2 = pv[3:4, 0:HP], pv[4:5, 0:HP], pv[5:6, 0:HP]

    # ---- load inputs ----
    X = x_ref[...].reshape(M, Fp)                # (TB*N, 8) node-major slab
    Lb = L_ref[...]                              # (TB, N, N)

    # ---- linear1 + LayerNorm(32) ----
    h = jnp.dot(X, w_lin1, preferred_element_type=f32) + b_lin1
    h = _layernorm(h, g_ln1, b_ln1)              # (M, 32)

    # ---- Primary capsule: one fused dot (L^0 | L^1 output slots), VPU L-prop ----
    h2 = h * h
    cat1 = jnp.concatenate([h, h2, h2 * h], axis=-1)                 # (M, 96)
    r1 = jnp.dot(cat1, wcap1, preferred_element_type=f32)            # (M, 256)
    loc1, nb1 = r1[:, 0:HP], r1[:, SLOT:SLOT + HP]
    prop1 = _lap_apply(Lb, nb1.reshape(TB, N, HP)).reshape(M, HP)    # L (X W1)
    c1 = _layernorm(jnp.maximum(loc1 + prop1 + b_c1, 0.0), g_lnc1, b_lnc1)

    # ---- Secondary capsule (moment blocks in 128-lane-aligned slots) ----
    zpad = jnp.zeros((M, SLOT - HP), f32)
    c1sq = c1 * c1
    cat2 = jnp.concatenate([c1, zpad, c1sq, zpad, c1sq * c1, zpad], axis=-1)  # (M, 384)
    r2 = jnp.dot(cat2, wcap2, preferred_element_type=f32)            # (M, 256)
    loc2, nb2 = r2[:, 0:HP], r2[:, SLOT:SLOT + HP]
    prop2 = _lap_apply(Lb, nb2.reshape(TB, N, HP)).reshape(M, HP)
    c2 = _layernorm(jnp.maximum(loc2 + prop2 + b_c2, 0.0), g_lnc2, b_lnc2)

    # x_caps = x_caps1.repeat(..., (H2*P)/(H1*P)=1) + x_caps2
    xc = (c1 + c2).reshape(TB, N, HP)                                # (TB, N, 96)

    # ---- agent / peers selection (narrow (TB,N,1) mask) ----
    # NOTE: agent_idx outside [0, N) silently yields agent_x = 0 (no OOB read).
    node_id = lax.broadcasted_iota(jnp.int32, (TB, N, 1), 1)
    amask = (node_id == aidx_ref[...].reshape(TB, 1, 1)).astype(f32)  # (TB, N, 1)
    agent_x = jnp.sum(xc * amask, axis=1)                             # (TB, 96)
    peers_x = jnp.sum(xc, axis=1) - agent_x                           # (TB, 96)

    # ---- context_l1( cat([time, agent_x, peers_x]) ), agent/peers dot fused ----
    zp = jnp.zeros((TB, SLOT - HP), f32)
    apcat = jnp.concatenate([agent_x, zp, peers_x, zp], axis=-1)      # (TB, 256)
    t = time_ref[...]                                                 # (TB, 1)
    h1 = _leaky_relu(t * w_ctx_t + b_ctx1 +
                     jnp.dot(apcat, w_ctx1, preferred_element_type=f32))

    # ---- context_l2 -> LayerNorm(128) -> LeakyReLU ----
    ho = jnp.dot(h1, w_ctx2, preferred_element_type=f32) + b_ctx2
    out_ref[...] = _leaky_relu(_layernorm(ho, g_ln2, b_ln2))          # (TB, 128)


# ---------------- parameters (logical layout, PyTorch-like) -----------------
def init_params(key):
    ks = iter(jax.random.split(key, 12))

    def lin(kk, fan_in, shape):
        s = 1.0 / float(fan_in) ** 0.5
        return jax.random.uniform(kk, shape, jnp.float32, -s, s)

    p = {}
    p["w_lin1"] = lin(next(ks), IN_FEATS, (IN_FEATS, H0))
    p["b_lin1"] = lin(next(ks), IN_FEATS, (H0,))
    p["g_ln1"] = jnp.ones((H0,), jnp.float32)
    p["b_ln1"] = jnp.zeros((H0,), jnp.float32)

    p["w_c1"] = lin(next(ks), H0, (P, K, H0, H1))        # W[j,i] : (32,32)
    p["b_c1"] = lin(next(ks), H0, (P, H1))
    p["g_lnc1"] = jnp.ones((HP,), jnp.float32)
    p["b_lnc1"] = jnp.zeros((HP,), jnp.float32)

    p["w_c2"] = lin(next(ks), HP, (P, K, HP, H2))        # W[j,i] : (96,32)
    p["b_c2"] = lin(next(ks), HP, (P, H2))
    p["g_lnc2"] = jnp.ones((HP,), jnp.float32)
    p["b_lnc2"] = jnp.zeros((HP,), jnp.float32)

    ctx_in = HP * 2 + 1
    p["w_ctx1"] = lin(next(ks), ctx_in, (ctx_in, HP))    # rows: [time|agent|peers]
    p["b_ctx1"] = lin(next(ks), ctx_in, (HP,))

    p["w_ctx2"] = lin(next(ks), HP, (HP, OUT_FEATS))
    p["b_ctx2"] = lin(next(ks), HP, (OUT_FEATS,))
    p["g_ln2"] = jnp.ones((OUT_FEATS,), jnp.float32)
    p["b_ln2"] = jnp.zeros((OUT_FEATS,), jnp.float32)
    return p


def pack_params(p):
    """Pack the 20 logical tensors into 2 contiguous f32 slabs (256 / 128 lanes)."""
    f32 = jnp.float32

    # ---- capsule slab (256 lanes): output cols [0:96]=L^0 block-diag,
    #      [128:224]=L^1 block-diag; secondary input moments in 128-row slots.
    wcap1 = jnp.zeros((HP, 2 * SLOT), f32)
    for j in range(P):
        wcap1 = wcap1.at[H0 * j:H0 * (j + 1), H1 * j:H1 * (j + 1)].set(p["w_c1"][j, 0])
        wcap1 = wcap1.at[H0 * j:H0 * (j + 1), SLOT + H1 * j:SLOT + H1 * (j + 1)].set(p["w_c1"][j, 1])
    wcap2 = jnp.zeros((P * SLOT, 2 * SLOT), f32)
    for j in range(P):
        wcap2 = wcap2.at[SLOT * j:SLOT * j + HP, H2 * j:H2 * (j + 1)].set(p["w_c2"][j, 0])
        wcap2 = wcap2.at[SLOT * j:SLOT * j + HP, SLOT + H2 * j:SLOT + H2 * (j + 1)].set(p["w_c2"][j, 1])
    cvec = jnp.zeros((8, 2 * SLOT), f32)
    cvec = cvec.at[0, :HP].set(p["b_c1"].reshape(-1))
    cvec = cvec.at[1, :HP].set(p["g_lnc1"])
    cvec = cvec.at[2, :HP].set(p["b_lnc1"])
    cvec = cvec.at[3, :HP].set(p["b_c2"].reshape(-1))
    cvec = cvec.at[4, :HP].set(p["g_lnc2"])
    cvec = cvec.at[5, :HP].set(p["b_lnc2"])
    caps_slab = jnp.concatenate([wcap1, wcap2, cvec], axis=0)
    assert caps_slab.shape == (_CAP_ROWS, 2 * SLOT)

    # ---- context/linear slab (128 lanes) ----
    w1 = p["w_ctx1"]                                  # (193, 96): [time|agent|peers]
    ctx = jnp.zeros((_CTX_ROWS, OUT_FEATS), f32)
    ctx = ctx.at[0:IN_FEATS, 0:H0].set(p["w_lin1"])
    ctx = ctx.at[_CTX_W1:_CTX_W1 + HP, 0:HP].set(w1[1:1 + HP])                   # agent rows
    ctx = ctx.at[_CTX_W1 + SLOT:_CTX_W1 + SLOT + HP, 0:HP].set(w1[1 + HP:1 + 2 * HP])  # peers rows
    ctx = ctx.at[_CTX_W2:_CTX_W2 + HP, :].set(p["w_ctx2"])
    v = _CTX_VEC
    ctx = ctx.at[v + 0, 0:H0].set(p["b_lin1"])
    ctx = ctx.at[v + 1, 0:H0].set(p["g_ln1"])
    ctx = ctx.at[v + 2, 0:H0].set(p["b_ln1"])
    ctx = ctx.at[v + 3, 0:HP].set(w1[0])
    ctx = ctx.at[v + 4, 0:HP].set(p["b_ctx1"])
    ctx = ctx.at[v + 5, :].set(p["b_ctx2"])
    ctx = ctx.at[v + 6, :].set(p["g_ln2"])
    ctx = ctx.at[v + 7, :].set(p["b_ln2"])
    return caps_slab, ctx


# ---------------- wrapper -----------------------------------------------------
def context_encoder_v2(params, X, L, agent_idx, time, *, tb=None):
    """X: (B,N,in_feats), L: (B,N,N), agent_idx: (B,1) int, time: (B,1) float."""
    B, N, Fin = X.shape
    assert Fin == IN_FEATS

    if tb is None:
        # Target >= 1024 node-rows per grid step (fills the MXU M dimension,
        # amortizes per-step pipeline overhead), capped at 256 graphs/step.
        tb = min(256, _round_up(_cdiv(1024, N), 8))
    tb = _round_up(int(tb), 8)
    tb = min(tb, _round_up(B, 8))
    # Keep >= 2 grid steps when the batch allows so dimension_semantics=
    # ("parallel",) can shard the grid across both TensorCores on v7x.
    if B > 16 and _round_up(B, tb) // tb < 2:
        tb = _round_up(_cdiv(B, 2), 8)
    B_pad = _round_up(B, tb)
    grid = (B_pad // tb,)

    f32 = jnp.float32
    Xp = jnp.zeros((B_pad, N, FPAD), f32).at[:B, :, :Fin].set(X.astype(f32))
    Lp = jnp.zeros((B_pad, N, N), f32).at[:B].set(L.astype(f32))
    tp = jnp.zeros((B_pad, 1), f32).at[:B].set(time.reshape(B, 1).astype(f32))
    ai = jnp.zeros((B_pad, 1), jnp.int32).at[:B].set(
        agent_idx.reshape(B, 1).astype(jnp.int32))

    caps_slab, ctx_slab = pack_params(params)

    out = pl.pallas_call(
        context_encoder_kernel,
        out_shape=jax.ShapeDtypeStruct((B_pad, OUT_FEATS), f32),
        grid_spec=pltpu.PrefetchScalarGridSpec(
            num_scalar_prefetch=0,
            grid=grid,
            in_specs=[
                pl.BlockSpec((tb, N, FPAD), lambda b: (b, 0, 0)),
                pl.BlockSpec((tb, N, N), lambda b: (b, 0, 0)),
                pl.BlockSpec((tb, 1), lambda b: (b, 0)),
                pl.BlockSpec((tb, 1), lambda b: (b, 0)),
                pl.BlockSpec(caps_slab.shape, lambda b: (0, 0)),
                pl.BlockSpec(ctx_slab.shape, lambda b: (0, 0)),
            ],
            out_specs=pl.BlockSpec((tb, OUT_FEATS), lambda b: (b, 0)),
        ),
        compiler_params=pltpu.CompilerParams(
            dimension_semantics=("parallel",),          # shards across TCs on v7x
            vmem_limit_bytes=32 * 1024 * 1024,          # not binding (~few MiB live)
        ),
    )(Xp, Lp, ai, tp, caps_slab, ctx_slab)
    return out[:B]


# ---------------- plain-JAX reference (for correctness check) ----------------
_PREC = jax.lax.Precision.HIGHEST


def reference_forward(params, X, L, agent_idx, time):
    B = X.shape[0]

    def ln(x, g, b):
        mu = x.mean(-1, keepdims=True)
        var = ((x - mu) ** 2).mean(-1, keepdims=True)
        return (x - mu) / jnp.sqrt(var + EPS) * g + b

    def lrelu(x):
        return jnp.where(x > 0, x, NEG_SLOPE * x)

    def capsule(Xin, Lb, W, bcap):
        outs = []
        for j in range(P):
            cur = Xin ** (j + 1)
            acc = jnp.zeros(Xin.shape[:-1] + (W.shape[-1],), jnp.float32) + bcap[j]
            for i in range(K):
                acc = acc + jnp.einsum('bnd,df->bnf', cur, W[j, i], precision=_PREC)
                if i + 1 < K:
                    cur = jnp.einsum('bij,bjd->bid', Lb, cur, precision=_PREC)
            outs.append(jnp.maximum(acc, 0.0))
        return jnp.concatenate(outs, axis=-1)

    h = jnp.einsum('bnd,df->bnf', X, params["w_lin1"], precision=_PREC) + params["b_lin1"]
    h = ln(h, params["g_ln1"], params["b_ln1"])
    c1 = ln(capsule(h, L, params["w_c1"], params["b_c1"]), params["g_lnc1"], params["b_lnc1"])
    c2 = ln(capsule(c1, L, params["w_c2"], params["b_c2"]), params["g_lnc2"], params["b_lnc2"])
    xc = c1 + c2
    ai = agent_idx.reshape(-1).astype(jnp.int32)
    agent_x = xc[jnp.arange(B), ai]
    peers_x = jnp.sum(xc, axis=1) - agent_x
    cat = jnp.concatenate([time.reshape(B, 1), agent_x, peers_x], axis=-1)
    h1 = lrelu(jnp.dot(cat, params["w_ctx1"], precision=_PREC) + params["b_ctx1"])
    h2 = jnp.dot(h1, params["w_ctx2"], precision=_PREC) + params["b_ctx2"]
    return lrelu(ln(h2, params["g_ln2"], params["b_ln2"]))


# ---------------- demo ----------------
if __name__ == "__main__":
    key = jax.random.PRNGKey(0)
    k_x, k_l, k_t, k_a, k_p = jax.random.split(key, 5)

    B, N = 2, 8
    X = jax.random.normal(k_x, (B, N, IN_FEATS), jnp.float32)

    # synthetic graph Laplacian: L = I - D^{-1} A  (random symmetric adjacency)
    A = (jax.random.uniform(k_l, (B, N, N)) > 0.5).astype(jnp.float32)
    A = jnp.maximum(A, jnp.transpose(A, (0, 2, 1))) * (1.0 - jnp.eye(N)[None])
    deg = jnp.maximum(jnp.sum(A, axis=-1, keepdims=True), 1.0)
    Lap = jnp.eye(N)[None] - A / deg

    time_in = jax.random.uniform(k_t, (B, 1), jnp.float32)
    agent_idx = jax.random.randint(k_a, (B, 1), 0, N)

    params = init_params(k_p)
    out = context_encoder_v2(params, X, Lap, agent_idx, time_in)
    out = jax.block_until_ready(out)

    assert out.shape == (B, OUT_FEATS), out.shape
    assert bool(jnp.all(jnp.isfinite(out)))

    ref = reference_forward(params, X, Lap, agent_idx, time_in)
    max_err = float(jnp.max(jnp.abs(out - ref)))
    assert bool(jnp.allclose(out, ref, rtol=2e-2, atol=2e-2)), max_err

    print("KERNEL_OK")
</pallas_src>

<mosaic_0001>
module attributes {stable_mosaic.version = 11 : i64} {
  func.func @context_encoder_kernel(%arg0: i32, %arg1: memref<8x8x8xf32, #tpu.memory_space<vmem>>, %arg2: memref<8x8x8xf32, #tpu.memory_space<vmem>>, %arg3: memref<8x1xi32, #tpu.memory_space<vmem>>, %arg4: memref<8x1xf32, #tpu.memory_space<vmem>>, %arg5: memref<488x256xf32, #tpu.memory_space<vmem>>, %arg6: memref<368x128xf32, #tpu.memory_space<vmem>>, %arg7: memref<8x128xf32, #tpu.memory_space<vmem>>) attributes {dimension_semantics = [#tpu.dimension_semantics<parallel>], iteration_bounds = array<i64: 1>, scalar_prefetch = 0 : i64, scratch_operands = 0 : i64, tpu.core_type = #tpu.core_type<tc>, window_params = [{transform_indices = @transform_0, window_bounds = array<i64: 8, 8, 8>}, {transform_indices = @transform_1, window_bounds = array<i64: 8, 8, 8>}, {transform_indices = @transform_2, window_bounds = array<i64: 8, 1>}, {transform_indices = @transform_3, window_bounds = array<i64: 8, 1>}, {pipeline_mode = #tpu.pipeline_mode<synchronous>, transform_indices = @transform_4, window_bounds = array<i64: 488, 256>}, {pipeline_mode = #tpu.pipeline_mode<synchronous>, transform_indices = @transform_5, window_bounds = array<i64: 368, 128>}, {transform_indices = @transform_6, window_bounds = array<i64: 8, 128>}]} {
    %c0 = arith.constant 0 : index
    %c0_0 = arith.constant 0 : index
    %0 = vector.load %arg6[%c0, %c0_0] : memref<368x128xf32, #tpu.memory_space<vmem>>, vector<8x128xf32>
    %1 = vector.extract_strided_slice %0 {offsets = [0, 0], sizes = [8, 32], strides = [1, 1]} : vector<8x128xf32> to vector<8x32xf32>
    %c8 = arith.constant 8 : index
    %c0_1 = arith.constant 0 : index
    %2 = vector.load %arg6[%c8, %c0_1] : memref<368x128xf32, #tpu.memory_space<vmem>>, vector<256x128xf32>
    %3 = vector.extract_strided_slice %2 {offsets = [0, 0], sizes = [256, 96], strides = [1, 1]} : vector<256x128xf32> to vector<256x96xf32>
    %c264 = arith.constant 264 : index
    %c0_2 = arith.constant 0 : index
    %4 = vector.load %arg6[%c264, %c0_2] : memref<368x128xf32, #tpu.memory_space<vmem>>, vector<96x128xf32>
    %c360 = arith.constant 360 : index
    %c0_3 = arith.constant 0 : index
    %5 = vector.load %arg6[%c360, %c0_3] : memref<368x128xf32, #tpu.memory_space<vmem>>, vector<8x128xf32>
    %6 = vector.extract_strided_slice %5 {offsets = [0, 0], sizes = [1, 32], strides = [1, 1]} : vector<8x128xf32> to vector<1x32xf32>
    %7 = vector.extract_strided_slice %5 {offsets = [1, 0], sizes = [1, 32], strides = [1, 1]} : vector<8x128xf32> to vector<1x32xf32>
    %8 = vector.extract_strided_slice %5 {offsets = [2, 0], sizes = [1, 32], strides = [1, 1]} : vector<8x128xf32> to vector<1x32xf32>
    %9 = vector.extract_strided_slice %5 {offsets = [3, 0], sizes = [1, 96], strides = [1, 1]} : vector<8x128xf32> to vector<1x96xf32>
    %10 = vector.extract_strided_slice %5 {offsets = [4, 0], sizes = [1, 96], strides = [1, 1]} : vector<8x128xf32> to vector<1x96xf32>
    %11 = vector.extract_strided_slice %5 {offsets = [5, 0], sizes = [1, 128], strides = [1, 1]} : vector<8x128xf32> to vector<1x128xf32>
    %12 = vector.extract_strided_slice %5 {offsets = [6, 0], sizes = [1, 128], strides = [1, 1]} : vector<8x128xf32> to vector<1x128xf32>
    %13 = vector.extract_strided_slice %5 {offsets = [7, 0], sizes = [1, 128], strides = [1, 1]} : vector<8x128xf32> to vector<1x128xf32>
    %c0_4 = arith.constant 0 : index
    %c0_5 = arith.constant 0 : index
    %14 = vector.load %arg5[%c0_4, %c0_5] : memref<488x256xf32, #tpu.memory_space<vmem>>, vector<96x256xf32>
    %c96 = arith.constant 96 : index
    %c0_6 = arith.constant 0 : index
    %15 = vector.load %arg5[%c96, %c0_6] : memref<488x256xf32, #tpu.memory_space<vmem>>, vector<384x256xf32>
    %c480 = arith.constant 480 : index
    %c0_7 = arith.constant 0 : index
    %16 = vector.load %arg5[%c480, %c0_7] : memref<488x256xf32, #tpu.memory_space<vmem>>, vector<8x256xf32>
    %17 = vector.extract_strided_slice %16 {offsets = [0, 0], sizes = [1, 96], strides = [1, 1]} : vector<8x256xf32> to vector<1x96xf32>
    %18 = vector.extract_strided_slice %16 {offsets = [1, 0], sizes = [1, 96], strides = [1, 1]} : vector<8x256xf32> to vector<1x96xf32>
    %19 = vector.extract_strided_slice %16 {offsets = [2, 0], sizes = [1, 96], strides = [1, 1]} : vector<8x256xf32> to vector<1x96xf32>
    %20 = vector.extract_strided_slice %16 {offsets = [3, 0], sizes = [1, 96], strides = [1, 1]} : vector<8x256xf32> to vector<1x96xf32>
    %21 = vector.extract_strided_slice %16 {offsets = [4, 0], sizes = [1, 96], strides = [1, 1]} : vector<8x256xf32> to vector<1x96xf32>
    %22 = vector.extract_strided_slice %16 {offsets = [5, 0], sizes = [1, 96], strides = [1, 1]} : vector<8x256xf32> to vector<1x96xf32>
    %c0_8 = arith.constant 0 : index
    %c0_9 = arith.constant 0 : index
    %c0_10 = arith.constant 0 : index
    %23 = vector.load %arg1[%c0_8, %c0_9, %c0_10] : memref<8x8x8xf32, #tpu.memory_space<vmem>>, vector<8x8x8xf32>
    %24 = vector.shape_cast %23 : vector<8x8x8xf32> to vector<64x8xf32>
    %c0_11 = arith.constant 0 : index
    %c0_12 = arith.constant 0 : index
    %c0_13 = arith.constant 0 : index
    %25 = vector.load %arg2[%c0_11, %c0_12, %c0_13] : memref<8x8x8xf32, #tpu.memory_space<vmem>>, vector<8x8x8xf32>
    %cst = arith.constant dense<0.000000e+00> : vector<64x32xf32>
    %26 = tpu.matmul %24, %1, %cst {dimension_numbers = #tpu.dot_dimension_numbers<[1], [0], [0], [1], [0, 0, 1, 1], [], []>} : vector<64x8xf32>, vector<8x32xf32>, vector<64x32xf32> -> vector<64x32xf32>
    %27 = vector.broadcast %6 : vector<1x32xf32> to vector<64x32xf32>
    %28 = arith.addf %26, %27 : vector<64x32xf32>
    %cst_14 = arith.constant dense<0.000000e+00> : vector<64xf32>
    %29 = vector.multi_reduction <add>, %28, %cst_14 [1] : vector<64x32xf32> to vector<64xf32>
    %30 = vector.shape_cast %29 : vector<64xf32> to vector<64x1xf32>
    %cst_15 = arith.constant 3.200000e+01 : f32
    %31 = vector.broadcast %cst_15 : f32 to vector<64x1xf32>
    %32 = arith.divf %30, %31 : vector<64x1xf32>
    %33 = arith.mulf %28, %28 : vector<64x32xf32>
    %cst_16 = arith.constant dense<0.000000e+00> : vector<64xf32>
    %34 = vector.multi_reduction <add>, %33, %cst_16 [1] : vector<64x32xf32> to vector<64xf32>
    %35 = vector.shape_cast %34 : vector<64xf32> to vector<64x1xf32>
    %cst_17 = arith.constant 3.200000e+01 : f32
    %36 = vector.broadcast %cst_17 : f32 to vector<64x1xf32>
    %37 = arith.divf %35, %36 : vector<64x1xf32>
    %38 = arith.mulf %32, %32 : vector<64x1xf32>
    %39 = arith.subf %37, %38 : vector<64x1xf32>
    %cst_18 = arith.constant 0.000000e+00 : f32
    %40 = vector.broadcast %cst_18 : f32 to vector<64x1xf32>
    %41 = arith.maximumf %39, %40 : vector<64x1xf32>
    %42 = vector.broadcast %32 : vector<64x1xf32> to vector<64x32xf32>
    %43 = arith.subf %28, %42 : vector<64x32xf32>
    %cst_19 = arith.constant 9.99999974E-6 : f32
    %44 = vector.broadcast %cst_19 : f32 to vector<64x1xf32>
    %45 = arith.addf %41, %44 : vector<64x1xf32>
    %46 = math.rsqrt %45 : vector<64x1xf32>
    %47 = vector.broadcast %46 : vector<64x1xf32> to vector<64x32xf32>
    %48 = arith.mulf %43, %47 : vector<64x32xf32>
    %49 = vector.broadcast %7 : vector<1x32xf32> to vector<64x32xf32>
    %50 = arith.mulf %48, %49 : vector<64x32xf32>
    %51 = vector.broadcast %8 : vector<1x32xf32> to vector<64x32xf32>
    %52 = arith.addf %50, %51 : vector<64x32xf32>
    %53 = arith.mulf %52, %52 : vector<64x32xf32>
    %54 = arith.mulf %53, %52 : vector<64x32xf32>
    %55 = tpu.concatenate %52, %53, %54 in 1 : vector<64x32xf32>, vector<64x32xf32>, vector<64x32xf32> -> vector<64x96xf32>
    %cst_20 = arith.constant dense<0.000000e+00> : vector<64x256xf32>
    %56 = tpu.matmul %55, %14, %cst_20 {dimension_numbers = #tpu.dot_dimension_numbers<[1], [0], [0], [1], [0, 0, 1, 1], [], []>} : vector<64x96xf32>, vector<96x256xf32>, vector<64x256xf32> -> vector<64x256xf32>
    %57 = vector.extract_strided_slice %56 {offsets = [0, 0], sizes = [64, 96], strides = [1, 1]} : vector<64x256xf32> to vector<64x96xf32>
    %58 = vector.extract_strided_slice %56 {offsets = [0, 128], sizes = [64, 96], strides = [1, 1]} : vector<64x256xf32> to vector<64x96xf32>
    %59 = vector.shape_cast %58 : vector<64x96xf32> to vector<8x8x96xf32>
    %60 = vector.extract_strided_slice %25 {offsets = [0, 0, 0], sizes = [8, 8, 1], strides = [1, 1, 1]} : vector<8x8x8xf32> to vector<8x8x1xf32>
    %61 = vector.extract_strided_slice %59 {offsets = [0, 0, 0], sizes = [8, 1, 96], strides = [1, 1, 1]} : vector<8x8x96xf32> to vector<8x1x96xf32>
    %62 = vector.broadcast %60 : vector<8x8x1xf32> to vector<8x8x96xf32>
    %63 = vector.broadcast %61 : vector<8x1x96xf32> to vector<8x8x96xf32>
    %64 = arith.mulf %62, %63 : vector<8x8x96xf32>
    %65 = vector.extract_strided_slice %25 {offsets = [0, 0, 1], sizes = [8, 8, 1], strides = [1, 1, 1]} : vector<8x8x8xf32> to vector<8x8x1xf32>
    %66 = vector.extract_strided_slice %59 {offsets = [0, 1, 0], sizes = [8, 1, 96], strides = [1, 1, 1]} : vector<8x8x96xf32> to vector<8x1x96xf32>
    %67 = vector.broadcast %65 : vector<8x8x1xf32> to vector<8x8x96xf32>
    %68 = vector.broadcast %66 : vector<8x1x96xf32> to vector<8x8x96xf32>
    %69 = arith.mulf %67, %68 : vector<8x8x96xf32>
    %70 = arith.addf %64, %69 : vector<8x8x96xf32>
    %71 = vector.extract_strided_slice %25 {offsets = [0, 0, 2], sizes = [8, 8, 1], strides = [1, 1, 1]} : vector<8x8x8xf32> to vector<8x8x1xf32>
    %72 = vector.extract_strided_slice %59 {offsets = [0, 2, 0], sizes = [8, 1, 96], strides = [1, 1, 1]} : vector<8x8x96xf32> to vector<8x1x96xf32>
    %73 = vector.broadcast %71 : vector<8x8x1xf32> to vector<8x8x96xf32>
    %74 = vector.broadcast %72 : vector<8x1x96xf32> to vector<8x8x96xf32>
    %75 = arith.mulf %73, %74 : vector<8x8x96xf32>
    %76 = arith.addf %70, %75 : vector<8x8x96xf32>
    %77 = vector.extract_strided_slice %25 {offsets = [0, 0, 3], sizes = [8, 8, 1], strides = [1, 1, 1]} : vector<8x8x8xf32> to vector<8x8x1xf32>
    %78 = vector.extract_strided_slice %59 {offsets = [0, 3, 0], sizes = [8, 1, 96], strides = [1, 1, 1]} : vector<8x8x96xf32> to vector<8x1x96xf32>
    %79 = vector.broadcast %77 : vector<8x8x1xf32> to vector<8x8x96xf32>
    %80 = vector.broadcast %78 : vector<8x1x96xf32> to vector<8x8x96xf32>
    %81 = arith.mulf %79, %80 : vector<8x8x96xf32>
    %82 = arith.addf %76, %81 : vector<8x8x96xf32>
    %83 = vector.extract_strided_slice %25 {offsets = [0, 0, 4], sizes = [8, 8, 1], strides = [1, 1, 1]} : vector<8x8x8xf32> to vector<8x8x1xf32>
    %84 = vector.extract_strided_slice %59 {offsets = [0, 4, 0], sizes = [8, 1, 96], strides = [1, 1, 1]} : vector<8x8x96xf32> to vector<8x1x96xf32>
    %85 = vector.broadcast %83 : vector<8x8x1xf32> to vector<8x8x96xf32>
    %86 = vector.broadcast %84 : vector<8x1x96xf32> to vector<8x8x96xf32>
    %87 = arith.mulf %85, %86 : vector<8x8x96xf32>
    %88 = arith.addf %82, %87 : vector<8x8x96xf32>
    %89 = vector.extract_strided_slice %25 {offsets = [0, 0, 5], sizes = [8, 8, 1], strides = [1, 1, 1]} : vector<8x8x8xf32> to vector<8x8x1xf32>
    %90 = vector.extract_strided_slice %59 {offsets = [0, 5, 0], sizes = [8, 1, 96], strides = [1, 1, 1]} : vector<8x8x96xf32> to vector<8x1x96xf32>
    %91 = vector.broadcast %89 : vector<8x8x1xf32> to vector<8x8x96xf32>
    %92 = vector.broadcast %90 : vector<8x1x96xf32> to vector<8x8x96xf32>
    %93 = arith.mulf %91, %92 : vector<8x8x96xf32>
    %94 = arith.addf %88, %93 : vector<8x8x96xf32>
    %95 = vector.extract_strided_slice %25 {offsets = [0, 0, 6], sizes = [8, 8, 1], strides = [1, 1, 1]} : vector<8x8x8xf32> to vector<8x8x1xf32>
    %96 = vector.extract_strided_slice %59 {offsets = [0, 6, 0], sizes = [8, 1, 96], strides = [1, 1, 1]} : vector<8x8x96xf32> to vector<8x1x96xf32>
    %97 = vector.broadcast %95 : vector<8x8x1xf32> to vector<8x8x96xf32>
    %98 = vector.broadcast %96 : vector<8x1x96xf32> to vector<8x8x96xf32>
    %99 = arith.mulf %97, %98 : vector<8x8x96xf32>
    %100 = arith.addf %94, %99 : vector<8x8x96xf32>
    %101 = vector.extract_strided_slice %25 {offsets = [0, 0, 7], sizes = [8, 8, 1], strides = [1, 1, 1]} : vector<8x8x8xf32> to vector<8x8x1xf32>
    %102 = vector.extract_strided_slice %59 {offsets = [0, 7, 0], sizes = [8, 1, 96], strides = [1, 1, 1]} : vector<8x8x96xf32> to vector<8x1x96xf32>
    %103 = vector.broadcast %101 : vector<8x8x1xf32> to vector<8x8x96xf32>
    %104 = vector.broadcast %102 : vector<8x1x96xf32> to vector<8x8x96xf32>
    %105 = arith.mulf %103, %104 : vector<8x8x96xf32>
    %106 = arith.addf %100, %105 : vector<8x8x96xf32>
    %107 = vector.shape_cast %106 : vector<8x8x96xf32> to vector<64x96xf32>
    %108 = arith.addf %57, %107 : vector<64x96xf32>
    %109 = vector.broadcast %17 : vector<1x96xf32> to vector<64x96xf32>
    %110 = arith.addf %108, %109 : vector<64x96xf32>
    %cst_21 = arith.constant 0.000000e+00 : f32
    %111 = vector.broadcast %cst_21 : f32 to vector<64x96xf32>
    %112 = arith.maximumf %110, %111 : vector<64x96xf32>
    %cst_22 = arith.constant dense<0.000000e+00> : vector<64xf32>
    %113 = vector.multi_reduction <add>, %112, %cst_22 [1] : vector<64x96xf32> to vector<64xf32>
    %114 = vector.shape_cast %113 : vector<64xf32> to vector<64x1xf32>
    %cst_23 = arith.constant 9.600000e+01 : f32
    %115 = vector.broadcast %cst_23 : f32 to vector<64x1xf32>
    %116 = arith.divf %114, %115 : vector<64x1xf32>
    %117 = arith.mulf %112, %112 : vector<64x96xf32>
    %cst_24 = arith.constant dense<0.000000e+00> : vector<64xf32>
    %118 = vector.multi_reduction <add>, %117, %cst_24 [1] : vector<64x96xf32> to vector<64xf32>
    %119 = vector.shape_cast %118 : vector<64xf32> to vector<64x1xf32>
    %cst_25 = arith.constant 9.600000e+01 : f32
    %120 = vector.broadcast %cst_25 : f32 to vector<64x1xf32>
    %121 = arith.divf %119, %120 : vector<64x1xf32>
    %122 = arith.mulf %116, %116 : vector<64x1xf32>
    %123 = arith.subf %121, %122 : vector<64x1xf32>
    %cst_26 = arith.constant 0.000000e+00 : f32
    %124 = vector.broadcast %cst_26 : f32 to vector<64x1xf32>
    %125 = arith.maximumf %123, %124 : vector<64x1xf32>
    %126 = vector.broadcast %116 : vector<64x1xf32> to vector<64x96xf32>
    %127 = arith.subf %112, %126 : vector<64x96xf32>
    %cst_27 = arith.constant 9.99999974E-6 : f32
    %128 = vector.broadcast %cst_27 : f32 to vector<64x1xf32>
    %129 = arith.addf %125, %128 : vector<64x1xf32>
    %130 = math.rsqrt %129 : vector<64x1xf32>
    %131 = vector.broadcast %130 : vector<64x1xf32> to vector<64x96xf32>
    %132 = arith.mulf %127, %131 : vector<64x96xf32>
    %133 = vector.broadcast %18 : vector<1x96xf32> to vector<64x96xf32>
    %134 = arith.mulf %132, %133 : vector<64x96xf32>
    %135 = vector.broadcast %19 : vector<1x96xf32> to vector<64x96xf32>
    %136 = arith.addf %134, %135 : vector<64x96xf32>
    %cst_28 = arith.constant 0.000000e+00 : f32
    %137 = vector.broadcast %cst_28 : f32 to vector<64x32xf32>
    %138 = arith.mulf %136, %136 : vector<64x96xf32>
    %139 = arith.mulf %138, %136 : vector<64x96xf32>
    %140 = tpu.concatenate %136, %137, %138, %137, %139, %137 in 1 : vector<64x96xf32>, vector<64x32xf32>, vector<64x96xf32>, vector<64x32xf32>, vector<64x96xf32>, vector<64x32xf32> -> vector<64x384xf32>
    %cst_29 = arith.constant dense<0.000000e+00> : vector<64x256xf32>
    %141 = tpu.matmul %140, %15, %cst_29 {dimension_numbers = #tpu.dot_dimension_numbers<[1], [0], [0], [1], [0, 0, 1, 1], [], []>} : vector<64x384xf32>, vector<384x256xf32>, vector<64x256xf32> -> vector<64x256xf32>
    %142 = vector.extract_strided_slice %141 {offsets = [0, 0], sizes = [64, 96], strides = [1, 1]} : vector<64x256xf32> to vector<64x96xf32>
    %143 = vector.extract_strided_slice %141 {offsets = [0, 128], sizes = [64, 96], strides = [1, 1]} : vector<64x256xf32> to vector<64x96xf32>
    %144 = vector.shape_cast %143 : vector<64x96xf32> to vector<8x8x96xf32>
    %145 = vector.extract_strided_slice %25 {offsets = [0, 0, 0], sizes = [8, 8, 1], strides = [1, 1, 1]} : vector<8x8x8xf32> to vector<8x8x1xf32>
    %146 = vector.extract_strided_slice %144 {offsets = [0, 0, 0], sizes = [8, 1, 96], strides = [1, 1, 1]} : vector<8x8x96xf32> to vector<8x1x96xf32>
    %147 = vector.broadcast %145 : vector<8x8x1xf32> to vector<8x8x96xf32>
    %148 = vector.broadcast %146 : vector<8x1x96xf32> to vector<8x8x96xf32>
    %149 = arith.mulf %147, %148 : vector<8x8x96xf32>
    %150 = vector.extract_strided_slice %25 {offsets = [0, 0, 1], sizes = [8, 8, 1], strides = [1, 1, 1]} : vector<8x8x8xf32> to vector<8x8x1xf32>
    %151 = vector.extract_strided_slice %144 {offsets = [0, 1, 0], sizes = [8, 1, 96], strides = [1, 1, 1]} : vector<8x8x96xf32> to vector<8x1x96xf32>
    %152 = vector.broadcast %150 : vector<8x8x1xf32> to vector<8x8x96xf32>
    %153 = vector.broadcast %151 : vector<8x1x96xf32> to vector<8x8x96xf32>
    %154 = arith.mulf %152, %153 : vector<8x8x96xf32>
    %155 = arith.addf %149, %154 : vector<8x8x96xf32>
    %156 = vector.extract_strided_slice %25 {offsets = [0, 0, 2], sizes = [8, 8, 1], strides = [1, 1, 1]} : vector<8x8x8xf32> to vector<8x8x1xf32>
    %157 = vector.extract_strided_slice %144 {offsets = [0, 2, 0], sizes = [8, 1, 96], strides = [1, 1, 1]} : vector<8x8x96xf32> to vector<8x1x96xf32>
    %158 = vector.broadcast %156 : vector<8x8x1xf32> to vector<8x8x96xf32>
    %159 = vector.broadcast %157 : vector<8x1x96xf32> to vector<8x8x96xf32>
    %160 = arith.mulf %158, %159 : vector<8x8x96xf32>
    %161 = arith.addf %155, %160 : vector<8x8x96xf32>
    %162 = vector.extract_strided_slice %25 {offsets = [0, 0, 3], sizes = [8, 8, 1], strides = [1, 1, 1]} : vector<8x8x8xf32> to vector<8x8x1xf32>
    %163 = vector.extract_strided_slice %144 {offsets = [0, 3, 0], sizes = [8, 1, 96], strides = [1, 1, 1]} : vector<8x8x96xf32> to vector<8x1x96xf32>
    %164 = vector.broadcast %162 : vector<8x8x1xf32> to vector<8x8x96xf32>
    %165 = vector.broadcast %163 : vector<8x1x96xf32> to vector<8x8x96xf32>
    %166 = arith.mulf %164, %165 : vector<8x8x96xf32>
    %167 = arith.addf %161, %166 : vector<8x8x96xf32>
    %168 = vector.extract_strided_slice %25 {offsets = [0, 0, 4], sizes = [8, 8, 1], strides = [1, 1, 1]} : vector<8x8x8xf32> to vector<8x8x1xf32>
    %169 = vector.extract_strided_slice %144 {offsets = [0, 4, 0], sizes = [8, 1, 96], strides = [1, 1, 1]} : vector<8x8x96xf32> to vector<8x1x96xf32>
    %170 = vector.broadcast %168 : vector<8x8x1xf32> to vector<8x8x96xf32>
    %171 = vector.broadcast %169 : vector<8x1x96xf32> to vector<8x8x96xf32>
    %172 = arith.mulf %170, %171 : vector<8x8x96xf32>
    %173 = arith.addf %167, %172 : vector<8x8x96xf32>
    %174 = vector.extract_strided_slice %25 {offsets = [0, 0, 5], sizes = [8, 8, 1], strides = [1, 1, 1]} : vector<8x8x8xf32> to vector<8x8x1xf32>
    %175 = vector.extract_strided_slice %144 {offsets = [0, 5, 0], sizes = [8, 1, 96], strides = [1, 1, 1]} : vector<8x8x96xf32> to vector<8x1x96xf32>
    %176 = vector.broadcast %174 : vector<8x8x1xf32> to vector<8x8x96xf32>
    %177 = vector.broadcast %175 : vector<8x1x96xf32> to vector<8x8x96xf32>
    %178 = arith.mulf %176, %177 : vector<8x8x96xf32>
    %179 = arith.addf %173, %178 : vector<8x8x96xf32>
    %180 = vector.extract_strided_slice %25 {offsets = [0, 0, 6], sizes = [8, 8, 1], strides = [1, 1, 1]} : vector<8x8x8xf32> to vector<8x8x1xf32>
    %181 = vector.extract_strided_slice %144 {offsets = [0, 6, 0], sizes = [8, 1, 96], strides = [1, 1, 1]} : vector<8x8x96xf32> to vector<8x1x96xf32>
    %182 = vector.broadcast %180 : vector<8x8x1xf32> to vector<8x8x96xf32>
    %183 = vector.broadcast %181 : vector<8x1x96xf32> to vector<8x8x96xf32>
    %184 = arith.mulf %182, %183 : vector<8x8x96xf32>
    %185 = arith.addf %179, %184 : vector<8x8x96xf32>
    %186 = vector.extract_strided_slice %25 {offsets = [0, 0, 7], sizes = [8, 8, 1], strides = [1, 1, 1]} : vector<8x8x8xf32> to vector<8x8x1xf32>
    %187 = vector.extract_strided_slice %144 {offsets = [0, 7, 0], sizes = [8, 1, 96], strides = [1, 1, 1]} : vector<8x8x96xf32> to vector<8x1x96xf32>
    %188 = vector.broadcast %186 : vector<8x8x1xf32> to vector<8x8x96xf32>
    %189 = vector.broadcast %187 : vector<8x1x96xf32> to vector<8x8x96xf32>
    %190 = arith.mulf %188, %189 : vector<8x8x96xf32>
    %191 = arith.addf %185, %190 : vector<8x8x96xf32>
    %192 = vector.shape_cast %191 : vector<8x8x96xf32> to vector<64x96xf32>
    %193 = arith.addf %142, %192 : vector<64x96xf32>
    %194 = vector.broadcast %20 : vector<1x96xf32> to vector<64x96xf32>
    %195 = arith.addf %193, %194 : vector<64x96xf32>
    %cst_30 = arith.constant 0.000000e+00 : f32
    %196 = vector.broadcast %cst_30 : f32 to vector<64x96xf32>
    %197 = arith.maximumf %195, %196 : vector<64x96xf32>
    %cst_31 = arith.constant dense<0.000000e+00> : vector<64xf32>
    %198 = vector.multi_reduction <add>, %197, %cst_31 [1] : vector<64x96xf32> to vector<64xf32>
    %199 = vector.shape_cast %198 : vector<64xf32> to vector<64x1xf32>
    %cst_32 = arith.constant 9.600000e+01 : f32
    %200 = vector.broadcast %cst_32 : f32 to vector<64x1xf32>
    %201 = arith.divf %199, %200 : vector<64x1xf32>
    %202 = arith.mulf %197, %197 : vector<64x96xf32>
    %cst_33 = arith.constant dense<0.000000e+00> : vector<64xf32>
    %203 = vector.multi_reduction <add>, %202, %cst_33 [1] : vector<64x96xf32> to vector<64xf32>
    %204 = vector.shape_cast %203 : vector<64xf32> to vector<64x1xf32>
    %cst_34 = arith.constant 9.600000e+01 : f32
    %205 = vector.broadcast %cst_34 : f32 to vector<64x1xf32>
    %206 = arith.divf %204, %205 : vector<64x1xf32>
    %207 = arith.mulf %201, %201 : vector<64x1xf32>
    %208 = arith.subf %206, %207 : vector<64x1xf32>
    %cst_35 = arith.constant 0.000000e+00 : f32
    %209 = vector.broadcast %cst_35 : f32 to vector<64x1xf32>
    %210 = arith.maximumf %208, %209 : vector<64x1xf32>
    %211 = vector.broadcast %201 : vector<64x1xf32> to vector<64x96xf32>
    %212 = arith.subf %197, %211 : vector<64x96xf32>
    %cst_36 = arith.constant 9.99999974E-6 : f32
    %213 = vector.broadcast %cst_36 : f32 to vector<64x1xf32>
    %214 = arith.addf %210, %213 : vector<64x1xf32>
    %215 = math.rsqrt %214 : vector<64x1xf32>
    %216 = vector.broadcast %215 : vector<64x1xf32> to vector<64x96xf32>
    %217 = arith.mulf %212, %216 : vector<64x96xf32>
    %218 = vector.broadcast %21 : vector<1x96xf32> to vector<64x96xf32>
    %219 = arith.mulf %217, %218 : vector<64x96xf32>
    %220 = vector.broadcast %22 : vector<1x96xf32> to vector<64x96xf32>
    %221 = arith.addf %219, %220 : vector<64x96xf32>
    %222 = arith.addf %136, %221 : vector<64x96xf32>
    %223 = vector.shape_cast %222 : vector<64x96xf32> to vector<8x8x96xf32>
    %224 = tpu.iota {dimensions = array<i32: 1>} : vector<8x8x1xi32>
    %c0_37 = arith.constant 0 : index
    %c0_38 = arith.constant 0 : index
    %225 = vector.load %arg3[%c0_37, %c0_38] : memref<8x1xi32, #tpu.memory_space<vmem>>, vector<8x1xi32>
    %226 = vector.shape_cast %225 : vector<8x1xi32> to vector<8x1x1xi32>
    %227 = vector.broadcast %226 : vector<8x1x1xi32> to vector<8x8x1xi32>
    %228 = arith.cmpi eq, %224, %227 : vector<8x8x1xi32>
    %229 = arith.extui %228 : vector<8x8x1xi1> to vector<8x8x1xi32>
    %230 = arith.sitofp %229 : vector<8x8x1xi32> to vector<8x8x1xf32>
    %231 = vector.broadcast %230 : vector<8x8x1xf32> to vector<8x8x96xf32>
    %232 = arith.mulf %223, %231 : vector<8x8x96xf32>
    %cst_39 = arith.constant dense<0.000000e+00> : vector<8x96xf32>
    %233 = vector.multi_reduction <add>, %232, %cst_39 [1] : vector<8x8x96xf32> to vector<8x96xf32>
    %cst_40 = arith.constant dense<0.000000e+00> : vector<8x96xf32>
    %234 = vector.multi_reduction <add>, %223, %cst_40 [1] : vector<8x8x96xf32> to vector<8x96xf32>
    %235 = arith.subf %234, %233 : vector<8x96xf32>
    %cst_41 = arith.constant 0.000000e+00 : f32
    %236 = vector.broadcast %cst_41 : f32 to vector<8x32xf32>
    %237 = tpu.concatenate %233, %236, %235, %236 in 1 : vector<8x96xf32>, vector<8x32xf32>, vector<8x96xf32>, vector<8x32xf32> -> vector<8x256xf32>
    %c0_42 = arith.constant 0 : index
    %c0_43 = arith.constant 0 : index
    %238 = vector.load %arg4[%c0_42, %c0_43] : memref<8x1xf32, #tpu.memory_space<vmem>>, vector<8x1xf32>
    %239 = vector.broadcast %238 : vector<8x1xf32> to vector<8x96xf32>
    %240 = vector.broadcast %9 : vector<1x96xf32> to vector<8x96xf32>
    %241 = arith.mulf %239, %240 : vector<8x96xf32>
    %242 = vector.broadcast %10 : vector<1x96xf32> to vector<8x96xf32>
    %243 = arith.addf %241, %242 : vector<8x96xf32>
    %cst_44 = arith.constant dense<0.000000e+00> : vector<8x96xf32>
    %244 = tpu.matmul %237, %3, %cst_44 {dimension_numbers = #tpu.dot_dimension_numbers<[1], [0], [0], [1], [0, 0, 1, 1], [], []>} : vector<8x256xf32>, vector<256x96xf32>, vector<8x96xf32> -> vector<8x96xf32>
    %245 = arith.addf %243, %244 : vector<8x96xf32>
    %cst_45 = arith.constant 0.000000e+00 : f32
    %246 = vector.broadcast %cst_45 : f32 to vector<8x96xf32>
    %247 = arith.cmpf ogt, %245, %246 : vector<8x96xf32>
    %cst_46 = arith.constant 0.00999999977 : f32
    %248 = vector.broadcast %cst_46 : f32 to vector<8x96xf32>
    %249 = arith.mulf %248, %245 : vector<8x96xf32>
    %250 = arith.select %247, %245, %249 : vector<8x96xi1>, vector<8x96xf32>
    %cst_47 = arith.constant dense<0.000000e+00> : vector<8x128xf32>
    %251 = tpu.matmul %250, %4, %cst_47 {dimension_numbers = #tpu.dot_dimension_numbers<[1], [0], [0], [1], [0, 0, 1, 1], [], []>} : vector<8x96xf32>, vector<96x128xf32>, vector<8x128xf32> -> vector<8x128xf32>
    %252 = vector.broadcast %11 : vector<1x128xf32> to vector<8x128xf32>
    %253 = arith.addf %251, %252 : vector<8x128xf32>
    %cst_48 = arith.constant dense<0.000000e+00> : vector<8xf32>
    %254 = vector.multi_reduction <add>, %253, %cst_48 [1] : vector<8x128xf32> to vector<8xf32>
    %255 = vector.shape_cast %254 : vector<8xf32> to vector<8x1xf32>
    %cst_49 = arith.constant 1.280000e+02 : f32
    %256 = vector.broadcast %cst_49 : f32 to vector<8x1xf32>
    %257 = arith.divf %255, %256 : vector<8x1xf32>
    %258 = arith.mulf %253, %253 : vector<8x128xf32>
    %cst_50 = arith.constant dense<0.000000e+00> : vector<8xf32>
    %259 = vector.multi_reduction <add>, %258, %cst_50 [1] : vector<8x128xf32> to vector<8xf32>
    %260 = vector.shape_cast %259 : vector<8xf32> to vector<8x1xf32>
    %cst_51 = arith.constant 1.280000e+02 : f32
    %261 = vector.broadcast %cst_51 : f32 to vector<8x1xf32>
    %262 = arith.divf %260, %261 : vector<8x1xf32>
    %263 = arith.mulf %257, %257 : vector<8x1xf32>
    %264 = arith.subf %262, %263 : vector<8x1xf32>
    %cst_52 = arith.constant 0.000000e+00 : f32
    %265 = vector.broadcast %cst_52 : f32 to vector<8x1xf32>
    %266 = arith.maximumf %264, %265 : vector<8x1xf32>
    %267 = vector.broadcast %257 : vector<8x1xf32> to vector<8x128xf32>
    %268 = arith.subf %253, %267 : vector<8x128xf32>
    %cst_53 = arith.constant 9.99999974E-6 : f32
    %269 = vector.broadcast %cst_53 : f32 to vector<8x1xf32>
    %270 = arith.addf %266, %269 : vector<8x1xf32>
    %271 = math.rsqrt %270 : vector<8x1xf32>
    %272 = vector.broadcast %271 : vector<8x1xf32> to vector<8x128xf32>
    %273 = arith.mulf %268, %272 : vector<8x128xf32>
    %274 = vector.broadcast %12 : vector<1x128xf32> to vector<8x128xf32>
    %275 = arith.mulf %273, %274 : vector<8x128xf32>
    %276 = vector.broadcast %13 : vector<1x128xf32> to vector<8x128xf32>
    %277 = arith.addf %275, %276 : vector<8x128xf32>
    %cst_54 = arith.constant 0.000000e+00 : f32
    %278 = vector.broadcast %cst_54 : f32 to vector<8x128xf32>
    %279 = arith.cmpf ogt, %277, %278 : vector<8x128xf32>
    %cst_55 = arith.constant 0.00999999977 : f32
    %280 = vector.broadcast %cst_55 : f32 to vector<8x128xf32>
    %281 = arith.mulf %280, %277 : vector<8x128xf32>
    %282 = arith.select %279, %277, %281 : vector<8x128xi1>, vector<8x128xf32>
    %c0_56 = arith.constant 0 : index
    %c0_57 = arith.constant 0 : index
    %283 = vector.load %arg7[%c0_56, %c0_57] : memref<8x128xf32, #tpu.memory_space<vmem>>, vector<8x128xf32>
    tpu.vector_store %arg7[%c0_56, %c0_57], %282 {strides = array<i32>} : memref<8x128xf32, #tpu.memory_space<vmem>>, vector<8x128xf32>,
    return
  }
  func.func @transform_0(%arg0: i32) -> (i32, i32, i32) {
    %c0_i32 = arith.constant 0 : i32
    %c0_i32_0 = arith.constant 0 : i32
    %c0_i32_1 = arith.constant 0 : i32
    return %arg0, %c0_i32, %c0_i32_0 : i32, i32, i32
  }
  func.func @transform_1(%arg0: i32) -> (i32, i32, i32) {
    %c0_i32 = arith.constant 0 : i32
    %c0_i32_0 = arith.constant 0 : i32
    %c0_i32_1 = arith.constant 0 : i32
    return %arg0, %c0_i32, %c0_i32_0 : i32, i32, i32
  }
  func.func @transform_2(%arg0: i32) -> (i32, i32) {
    %c0_i32 = arith.constant 0 : i32
    %c0_i32_0 = arith.constant 0 : i32
    return %arg0, %c0_i32 : i32, i32
  }
  func.func @transform_3(%arg0: i32) -> (i32, i32) {
    %c0_i32 = arith.constant 0 : i32
    %c0_i32_0 = arith.constant 0 : i32
    return %arg0, %c0_i32 : i32, i32
  }
  func.func @transform_4(%arg0: i32) -> (i32, i32) {
    %c0_i32 = arith.constant 0 : i32
    %c0_i32_0 = arith.constant 0 : i32
    %c0_i32_1 = arith.constant 0 : i32
    return %c0_i32, %c0_i32_0 : i32, i32
  }
  func.func @transform_5(%arg0: i32) -> (i32, i32) {
    %c0_i32 = arith.constant 0 : i32
    %c0_i32_0 = arith.constant 0 : i32
    %c0_i32_1 = arith.constant 0 : i32
    return %c0_i32, %c0_i32_0 : i32, i32
  }
  func.func @transform_6(%arg0: i32) -> (i32, i32) {
    %c0_i32 = arith.constant 0 : i32
    %c0_i32_0 = arith.constant 0 : i32
    return %arg0, %c0_i32 : i32, i32
  }
}

</mosaic_0001>

<llo_original>
// kernel: tpu_custom_call.1
$region0: #{tpu_custom_call.1}
  #allocation0 [shape = 'u32[]', space=smem, size = 0x4, offset = 0x4, fixed_abs, tag = 'smem constant byte address 0x4 - core index']
  #allocation1 [shape = 'u32[72,128]{1,0:T(1,128)}', space=vmem, size = 0x9000, scoped, tag = 'internal scratch']
  %s0 = inlined_call_operand.hbm [shape: f32[8,8,8], index: 0, kind: input, shape index: {}]
  %s1 = inlined_call_operand.hbm [shape: f32[8,8,8], index: 1, kind: input, shape index: {}]
  %s2 = inlined_call_operand.vmem [shape: s32[8,1], index: 2, kind: input, shape index: {}]
  %s3 = inlined_call_operand.vmem [shape: f32[8,1], index: 3, kind: input, shape index: {}]
  %s4 = inlined_call_operand.hbm [shape: f32[488,256], index: 4, kind: input, shape index: {}]
  %s5 = inlined_call_operand.hbm [shape: f32[368,128], index: 5, kind: input, shape index: {}]
  %s6 = inlined_call_operand.hbm [shape: f32[8,128], index: 6, kind: output, shape index: {}]
  %s7 = sld [smem:[#allocation0]]
  $region50: #{tpu_custom_call.1} parent=0
    _
  %s9 = ssub.s32 1, %s7
  %s10 = scalar_select 0, %s9, %s7
  $region1: #{tpu_custom_call.1} parent=0
    #allocation2 [shape = 'u8[32768]{0}', space=vmem, size = 0x8000, scoped, tag = 'input window, operand 0, single buffered']
    #allocation3 [shape = 's32[1]{0}', space=sflag, size = 0x4, scoped, tag = 'scoped memory for tpu_custom_call.1']
    #allocation4 [shape = 's32[1]{0}', space=sflag, size = 0x4, scoped, tag = 'scoped memory for tpu_custom_call.1']
    #allocation5 [shape = 'u8[32768]{0}', space=vmem, size = 0x8000, scoped, tag = 'input window, operand 1, single buffered']
    #allocation6 [shape = 's32[1]{0}', space=sflag, size = 0x4, scoped, tag = 'scoped memory for tpu_custom_call.1']
    #allocation7 [shape = 'u8[499712]{0}', space=vmem, size = 0x7a000, scoped, tag = 'input window, operand 4, single buffered']
    #allocation8 [shape = 'u8[188416]{0}', space=vmem, size = 0x2e000, scoped, tag = 'input window, operand 5, single buffered']
    #allocation9 [shape = 's32[1]{0}', space=sflag, size = 0x4, scoped, tag = 'scoped memory for tpu_custom_call.1']
    #allocation10 [shape = 'u8[4096]{0}', space=vmem, size = 0x1000, scoped, tag = 'output window, operand 0, single buffered']
    %11 = vsyncpa [#allocation3], 0
    %12 = vsyncpa [#allocation6], 0
    %13 = vsyncpa [#allocation9], 0
    %14 = vsyncpa [#allocation4], 0
    // Predicated region
    $region2: #{tpu_custom_call.1} parent=1 // pred_check
      _
    $region3: #{tpu_custom_call.1} parent=1 // pred_check_branch
      %16 = sbr.rel (0) target = $region5
    $region4: #{tpu_custom_call.1} parent=1 // pred_region
      %18 = vsyncadd [#allocation3], 0
      %s19 = sshll.u32 %s0, 4
      %s20 = int_to_ptr.hbm [resolvable:$true] %s19
      %s21 = sshll.u32 [#allocation2], 4
      %s22 = int_to_ptr.vmem [resolvable:$true] %s21
      %27 = dma.hbm_to_vmem [thread:$0]  %s20, 1024, %s22, [#allocation3], 128, 128, 8
    $region5: #{tpu_custom_call.1} parent=1 // pred_fallthru
      _
    // Predicated region
    $region6: #{tpu_custom_call.1} parent=1 // pred_check
      _
    $region7: #{tpu_custom_call.1} parent=1 // pred_check_branch
      %29 = sbr.rel (0) target = $region9
    $region8: #{tpu_custom_call.1} parent=1 // pred_region
      %31 = vsyncadd [#allocation6], 0
      %s32 = sshll.u32 %s1, 4
      %s33 = int_to_ptr.hbm [resolvable:$true] %s32
      %s34 = sshll.u32 [#allocation5], 4
      %s35 = int_to_ptr.vmem [resolvable:$true] %s34
      %40 = dma.hbm_to_vmem [thread:$0]  %s33, 1024, %s35, [#allocation6], 128, 128, 8
    $region9: #{tpu_custom_call.1} parent=1 // pred_fallthru
      _
    // Predicated region
    $region10: #{tpu_custom_call.1} parent=1 // pred_check
      _
    $region11: #{tpu_custom_call.1} parent=1 // pred_check_branch
      %42 = sbr.rel (0) target = $region13
    $region12: #{tpu_custom_call.1} parent=1 // pred_region
      _
    $region13: #{tpu_custom_call.1} parent=1 // pred_fallthru
      _
    // Predicated region
    $region14: #{tpu_custom_call.1} parent=1 // pred_check
      _
    $region15: #{tpu_custom_call.1} parent=1 // pred_check_branch
      %44 = sbr.rel (0) target = $region17
    $region16: #{tpu_custom_call.1} parent=1 // pred_region
      _
    $region17: #{tpu_custom_call.1} parent=1 // pred_fallthru
      _
    // Predicated region
    $region18: #{tpu_custom_call.1} parent=1 // pred_check
      _
    $region19: #{tpu_custom_call.1} parent=1 // pred_check_branch
      %46 = sbr.rel (0) target = $region21
    $region20: #{tpu_custom_call.1} parent=1 // pred_region
      %48 = vsyncadd [#allocation6], 0
      %s49 = sshll.u32 %s4, 4
      %s50 = int_to_ptr.hbm [resolvable:$true] %s49
      %s51 = sshll.u32 [#allocation7], 4
      %s52 = int_to_ptr.vmem [resolvable:$true] %s51
      %57 = dma.hbm_to_vmem [thread:$0]  %s50, 15616, %s52, [#allocation6], 256, 256, 16
    $region21: #{tpu_custom_call.1} parent=1 // pred_fallthru
      _
    // Predicated region
    $region22: #{tpu_custom_call.1} parent=1 // pred_check
      _
    $region23: #{tpu_custom_call.1} parent=1 // pred_check_branch
      %59 = sbr.rel (0) target = $region25
    $region24: #{tpu_custom_call.1} parent=1 // pred_region
      %61 = vsyncadd [#allocation9], 0
      %s62 = sshll.u32 %s5, 4
      %s63 = int_to_ptr.hbm [resolvable:$true] %s62
      %s64 = sshll.u32 [#allocation8], 4
      %s65 = int_to_ptr.vmem [resolvable:$true] %s64
      %70 = dma.hbm_to_vmem [thread:$0]  %s63, 5888, %s65, [#allocation9], 128, 128, 8
    $region25: #{tpu_custom_call.1} parent=1 // pred_fallthru
      _
    // Predicated region
    $region26: #{tpu_custom_call.1} parent=1 // pred_check
      _
    $region27: #{tpu_custom_call.1} parent=1 // pred_check_branch
      %72 = sbr.rel (0) target = $region29
    $region28: #{tpu_custom_call.1} parent=1 // pred_region
      %74 = dma.done [#allocation3], 1024
    $region29: #{tpu_custom_call.1} parent=1 // pred_fallthru
      _
    // Predicated region
    $region30: #{tpu_custom_call.1} parent=1 // pred_check
      _
    $region31: #{tpu_custom_call.1} parent=1 // pred_check_branch
      %76 = sbr.rel (0) target = $region33
    $region32: #{tpu_custom_call.1} parent=1 // pred_region
      %78 = dma.done [#allocation6], 1024
    $region33: #{tpu_custom_call.1} parent=1 // pred_fallthru
      _
    // Predicated region
    $region34: #{tpu_custom_call.1} parent=1 // pred_check
      _
    $region35: #{tpu_custom_call.1} parent=1 // pred_check_branch
      %80 = sbr.rel (0) target = $region37
    $region36: #{tpu_custom_call.1} parent=1 // pred_region
      %82 = dma.done [#allocation6], 15616
    $region37: #{tpu_custom_call.1} parent=1 // pred_fallthru
      _
    // Predicated region
    $region38: #{tpu_custom_call.1} parent=1 // pred_check
      _
    $region39: #{tpu_custom_call.1} parent=1 // pred_check_branch
      %84 = sbr.rel (0) target = $region41
    $region40: #{tpu_custom_call.1} parent=1 // pred_region
      %86 = dma.done [#allocation9], 5888
    $region41: #{tpu_custom_call.1} parent=1 // pred_fallthru
      _
    %v87 = vld [vmem:[#allocation8] sm:$0xff]
    %v88 = vld [vmem:[#allocation8 + $0x8] sm:$0xff]
    %v89 = vld [vmem:[#allocation8 + $0x10] sm:$0xff]
    %v90 = vld [vmem:[#allocation8 + $0x18] sm:$0xff]
    %v91 = vld [vmem:[#allocation8 + $0x20] sm:$0xff]
    %v92 = vld [vmem:[#allocation8 + $0x28] sm:$0xff]
    %v93 = vld [vmem:[#allocation8 + $0x30] sm:$0xff]
    %v94 = vld [vmem:[#allocation8 + $0x38] sm:$0xff]
    %v95 = vld [vmem:[#allocation8 + $0x40] sm:$0xff]
    %v96 = vld [vmem:[#allocation8 + $0x48] sm:$0xff]
    %v97 = vld [vmem:[#allocation8 + $0x50] sm:$0xff]
    %v98 = vld [vmem:[#allocation8 + $0x58] sm:$0xff]
    %v99 = vld [vmem:[#allocation8 + $0x60] sm:$0xff]
    %v100 = vld [vmem:[#allocation8 + $0x68] sm:$0xff]
    %v101 = vld [vmem:[#allocation8 + $0x70] sm:$0xff]
    %v102 = vld [vmem:[#allocation8 + $0x78] sm:$0xff]
    %v103 = vld [vmem:[#allocation8 + $0x80] sm:$0xff]
    %v104 = vld [vmem:[#allocation8 + $0x88] sm:$0xff]
    %v105 = vld [vmem:[#allocation8 + $0x90] sm:$0xff]
    %v106 = vld [vmem:[#allocation8 + $0x98] sm:$0xff]
    %v107 = vld [vmem:[#allocation8 + $0xa0] sm:$0xff]
    %v108 = vld [vmem:[#allocation8 + $0xa8] sm:$0xff]
    %v109 = vld [vmem:[#allocation8 + $0xb0] sm:$0xff]
    %v110 = vld [vmem:[#allocation8 + $0xb8] sm:$0xff]
    %v111 = vld [vmem:[#allocation8 + $0xc0] sm:$0xff]
    %v112 = vld [vmem:[#allocation8 + $0xc8] sm:$0xff]
    %v113 = vld [vmem:[#allocation8 + $0xd0] sm:$0xff]
    %v114 = vld [vmem:[#allocation8 + $0xd8] sm:$0xff]
    %v115 = vld [vmem:[#allocation8 + $0xe0] sm:$0xff]
    %v116 = vld [vmem:[#allocation8 + $0xe8] sm:$0xff]
    %v117 = vld [vmem:[#allocation8 + $0xf0] sm:$0xff]
    %v118 = vld [vmem:[#allocation8 + $0xf8] sm:$0xff]
    %v119 = vld [vmem:[#allocation8 + $0x100] sm:$0xff]
    %v120 = vld [vmem:[#allocation8 + $0x108] sm:$0xff]
    %v121 = vld [vmem:[#allocation8 + $0x110] sm:$0xff]
    %v122 = vld [vmem:[#allocation8 + $0x118] sm:$0xff]
    %v123 = vld [vmem:[#allocation8 + $0x120] sm:$0xff]
    %v124 = vld [vmem:[#allocation8 + $0x128] sm:$0xff]
    %v125 = vld [vmem:[#allocation8 + $0x130] sm:$0xff]
    %v126 = vld [vmem:[#allocation8 + $0x138] sm:$0xff]
    %v127 = vld [vmem:[#allocation8 + $0x140] sm:$0xff]
    %v128 = vld [vmem:[#allocation8 + $0x148] sm:$0xff]
    %v129 = vld [vmem:[#allocation8 + $0x150] sm:$0xff]
    %v130 = vld [vmem:[#allocation8 + $0x158] sm:$0xff]
    %v131 = vld [vmem:[#allocation8 + $0x160] sm:$0xff]
    %v132 = vld [vmem:[#allocation8 + $0x168] sm:$0xff]
    %v133 = vld [vmem:[#allocation7] sm:$0xff]
    %v134 = vld [vmem:[#allocation7 + $0x8] sm:$0xff]
    %v135 = vld [vmem:[#allocation7 + $0x10] sm:$0xff]
    %v136 = vld [vmem:[#allocation7 + $0x18] sm:$0xff]
    %v137 = vld [vmem:[#allocation7 + $0x20] sm:$0xff]
    %v138 = vld [vmem:[#allocation7 + $0x28] sm:$0xff]
    %v139 = vld [vmem:[#allocation7 + $0x30] sm:$0xff]
    %v140 = vld [vmem:[#allocation7 + $0x38] sm:$0xff]
    %v141 = vld [vmem:[#allocation7 + $0x40] sm:$0xff]
    %v142 = vld [vmem:[#allocation7 + $0x48] sm:$0xff]
    %v143 = vld [vmem:[#allocation7 + $0x50] sm:$0xff]
    %v144 = vld [vmem:[#allocation7 + $0x58] sm:$0xff]
    %v145 = vld [vmem:[#allocation7 + $0x60] sm:$0xff]
    %v146 = vld [vmem:[#allocation7 + $0x68] sm:$0xff]
    %v147 = vld [vmem:[#allocation7 + $0x70] sm:$0xff]
    %v148 = vld [vmem:[#allocation7 + $0x78] sm:$0xff]
    %v149 = vld [vmem:[#allocation7 + $0x80] sm:$0xff]
    %v150 = vld [vmem:[#allocation7 + $0x88] sm:$0xff]
    %v151 = vld [vmem:[#allocation7 + $0x90] sm:$0xff]
    %v152 = vld [vmem:[#allocation7 + $0x98] sm:$0xff]
    %v153 = vld [vmem:[#allocation7 + $0xa0] sm:$0xff]
    %v154 = vld [vmem:[#allocation7 + $0xa8] sm:$0xff]
    %v155 = vld [vmem:[#allocation7 + $0xb0] sm:$0xff]
    %v156 = vld [vmem:[#allocation7 + $0xb8] sm:$0xff]
    %v157 = vld [vmem:[#allocation7 + $0xc0] sm:$0xff]
    %v158 = vld [vmem:[#allocation7 + $0xc8] sm:$0xff]
    %v159 = vld [vmem:[#allocation7 + $0xd0] sm:$0xff]
    %v160 = vld [vmem:[#allocation7 + $0xd8] sm:$0xff]
    %v161 = vld [vmem:[#allocation7 + $0xe0] sm:$0xff]
    %v162 = vld [vmem:[#allocation7 + $0xe8] sm:$0xff]
    %v163 = vld [vmem:[#allocation7 + $0xf0] sm:$0xff]
    %v164 = vld [vmem:[#allocation7 + $0xf8] sm:$0xff]
    %v165 = vld [vmem:[#allocation7 + $0x100] sm:$0xff]
    %v166 = vld [vmem:[#allocation7 + $0x108] sm:$0xff]
    %v167 = vld [vmem:[#allocation7 + $0x110] sm:$0xff]
    %v168 = vld [vmem:[#allocation7 + $0x118] sm:$0xff]
    %v169 = vld [vmem:[#allocation7 + $0x120] sm:$0xff]
    %v170 = vld [vmem:[#allocation7 + $0x128] sm:$0xff]
    %v171 = vld [vmem:[#allocation7 + $0x130] sm:$0xff]
    %v172 = vld [vmem:[#allocation7 + $0x138] sm:$0xff]
    %v173 = vld [vmem:[#allocation7 + $0x140] sm:$0xff]
    %v174 = vld [vmem:[#allocation7 + $0x148] sm:$0xff]
    %v175 = vld [vmem:[#allocation7 + $0x150] sm:$0xff]
    %v176 = vld [vmem:[#allocation7 + $0x158] sm:$0xff]
    %v177 = vld [vmem:[#allocation7 + $0x160] sm:$0xff]
    %v178 = vld [vmem:[#allocation7 + $0x168] sm:$0xff]
    %v179 = vld [vmem:[#allocation7 + $0x170] sm:$0xff]
    %v180 = vld [vmem:[#allocation7 + $0x178] sm:$0xff]
    %v181 = vld [vmem:[#allocation7 + $0x180] sm:$0xff]
    %v182 = vld [vmem:[#allocation7 + $0x188] sm:$0xff]
    %v183 = vld [vmem:[#allocation7 + $0x190] sm:$0xff]
    %v184 = vld [vmem:[#allocation7 + $0x198] sm:$0xff]
    %v185 = vld [vmem:[#allocation7 + $0x1a0] sm:$0xff]
    %v186 = vld [vmem:[#allocation7 + $0x1a8] sm:$0xff]
    %v187 = vld [vmem:[#allocation7 + $0x1b0] sm:$0xff]
    %v188 = vld [vmem:[#allocation7 + $0x1b8] sm:$0xff]
    %v189 = vld [vmem:[#allocation7 + $0x1c0] sm:$0xff]
    %v190 = vld [vmem:[#allocation7 + $0x1c8] sm:$0xff]
    %v191 = vld [vmem:[#allocation7 + $0x1d0] sm:$0xff]
    %v192 = vld [vmem:[#allocation7 + $0x1d8] sm:$0xff]
    %v193 = vld [vmem:[#allocation7 + $0x1e0] sm:$0xff]
    %v194 = vld [vmem:[#allocation7 + $0x1e8] sm:$0xff]
    %v195 = vld [vmem:[#allocation7 + $0x1f0] sm:$0xff]
    %v196 = vld [vmem:[#allocation7 + $0x1f8] sm:$0xff]
    %v197 = vld [vmem:[#allocation7 + $0x200] sm:$0xff]
    %v198 = vld [vmem:[#allocation7 + $0x208] sm:$0xff]
    %v199 = vld [vmem:[#allocation7 + $0x210] sm:$0xff]
    %v200 = vld [vmem:[#allocation7 + $0x218] sm:$0xff]
    %v201 = vld [vmem:[#allocation7 + $0x220] sm:$0xff]
    %v202 = vld [vmem:[#allocation7 + $0x228] sm:$0xff]
    %v203 = vld [vmem:[#allocation7 + $0x230] sm:$0xff]
    %v204 = vld [vmem:[#allocation7 + $0x238] sm:$0xff]
    %v205 = vld [vmem:[#allocation7 + $0x240] sm:$0xff]
    %v206 = vld [vmem:[#allocation7 + $0x248] sm:$0xff]
    %v207 = vld [vmem:[#allocation7 + $0x250] sm:$0xff]
    %v208 = vld [vmem:[#allocation7 + $0x258] sm:$0xff]
    %v209 = vld [vmem:[#allocation7 + $0x260] sm:$0xff]
    %v210 = vld [vmem:[#allocation7 + $0x268] sm:$0xff]
    %v211 = vld [vmem:[#allocation7 + $0x270] sm:$0xff]
    %v212 = vld [vmem:[#allocation7 + $0x278] sm:$0xff]
    %v213 = vld [vmem:[#allocation7 + $0x280] sm:$0xff]
    %v214 = vld [vmem:[#allocation7 + $0x288] sm:$0xff]
    %v215 = vld [vmem:[#allocation7 + $0x290] sm:$0xff]
    %v216 = vld [vmem:[#allocation7 + $0x298] sm:$0xff]
    %v217 = vld [vmem:[#allocation7 + $0x2a0] sm:$0xff]
    %v218 = vld [vmem:[#allocation7 + $0x2a8] sm:$0xff]
    %v219 = vld [vmem:[#allocation7 + $0x2b0] sm:$0xff]
    %v220 = vld [vmem:[#allocation7 + $0x2b8] sm:$0xff]
    %v221 = vld [vmem:[#allocation7 + $0x2c0] sm:$0xff]
    %v222 = vld [vmem:[#allocation7 + $0x2c8] sm:$0xff]
    %v223 = vld [vmem:[#allocation7 + $0x2d0] sm:$0xff]
    %v224 = vld [vmem:[#allocation7 + $0x2d8] sm:$0xff]
    %v225 = vld [vmem:[#allocation7 + $0x2e0] sm:$0xff]
    %v226 = vld [vmem:[#allocation7 + $0x2e8] sm:$0xff]
    %v227 = vld [vmem:[#allocation7 + $0x2f0] sm:$0xff]
    %v228 = vld [vmem:[#allocation7 + $0x2f8] sm:$0xff]
    %v229 = vld [vmem:[#allocation7 + $0x300] sm:$0xff]
    %v230 = vld [vmem:[#allocation7 + $0x308] sm:$0xff]
    %v231 = vld [vmem:[#allocation7 + $0x310] sm:$0xff]
    %v232 = vld [vmem:[#allocation7 + $0x318] sm:$0xff]
    %v233 = vld [vmem:[#allocation7 + $0x320] sm:$0xff]
    %v234 = vld [vmem:[#allocation7 + $0x328] sm:$0xff]
    %v235 = vld [vmem:[#allocation7 + $0x330] sm:$0xff]
    %v236 = vld [vmem:[#allocation7 + $0x338] sm:$0xff]
    %v237 = vld [vmem:[#allocation7 + $0x340] sm:$0xff]
    %v238 = vld [vmem:[#allocation7 + $0x348] sm:$0xff]
    %v239 = vld [vmem:[#allocation7 + $0x350] sm:$0xff]
    %v240 = vld [vmem:[#allocation7 + $0x358] sm:$0xff]
    %v241 = vld [vmem:[#allocation7 + $0x360] sm:$0xff]
    %v242 = vld [vmem:[#allocation7 + $0x368] sm:$0xff]
    %v243 = vld [vmem:[#allocation7 + $0x370] sm:$0xff]
    %v244 = vld [vmem:[#allocation7 + $0x378] sm:$0xff]
    %v245 = vld [vmem:[#allocation7 + $0x380] sm:$0xff]
    %v246 = vld [vmem:[#allocation7 + $0x388] sm:$0xff]
    %v247 = vld [vmem:[#allocation7 + $0x390] sm:$0xff]
    %v248 = vld [vmem:[#allocation7 + $0x398] sm:$0xff]
    %v249 = vld [vmem:[#allocation7 + $0x3a0] sm:$0xff]
    %v250 = vld [vmem:[#allocation7 + $0x3a8] sm:$0xff]
    %v251 = vld [vmem:[#allocation7 + $0x3b0] sm:$0xff]
    %v252 = vld [vmem:[#allocation7 + $0x3b8] sm:$0xff]
    %v253 = vld [vmem:[#allocation7 + $0x3c0] sm:$0xff]
    %v254 = vld [vmem:[#allocation2] sm:$0xff]
    %v255 = vld [vmem:[#allocation2 + $0x8] sm:$0xff]
    %v256 = vld [vmem:[#allocation2 + $0x10] sm:$0xff]
    %v257 = vld [vmem:[#allocation2 + $0x18] sm:$0xff]
    %v258 = vld [vmem:[#allocation2 + $0x20] sm:$0xff]
    %v259 = vld [vmem:[#allocation2 + $0x28] sm:$0xff]
    %v260 = vld [vmem:[#allocation2 + $0x30] sm:$0xff]
    %v261 = vld [vmem:[#allocation2 + $0x38] sm:$0xff]
    %v262 = vld [vmem:[#allocation5] sm:$0xff]
    %v263 = vld [vmem:[#allocation5 + $0x8] sm:$0xff]
    %v264 = vld [vmem:[#allocation5 + $0x10] sm:$0xff]
    %v265 = vld [vmem:[#allocation5 + $0x18] sm:$0xff]
    %v266 = vld [vmem:[#allocation5 + $0x20] sm:$0xff]
    %v267 = vld [vmem:[#allocation5 + $0x28] sm:$0xff]
    %v268 = vld [vmem:[#allocation5 + $0x30] sm:$0xff]
    %v269 = vld [vmem:[#allocation5 + $0x38] sm:$0xff]
    %v270 = vperm.slane %v132, 0
    %vm271 = vcmask 64512
    %v273 = vsel %vm271, %v254, 0
    %v276 = vsel %vm271, %v255, 0
    %v279 = vsel %vm271, %v256, 0
    %v282 = vsel %vm271, %v257, 0
    %v285 = vsel %vm271, %v258, 0
    %v288 = vsel %vm271, %v259, 0
    %v291 = vsel %vm271, %v260, 0
    %v294 = vsel %vm271, %v261, 0
    %296 = vmatpush.msra.mxu0 0.0
    %297 = vmatpush.msra.mxu0 0.0
    %298 = vmatpush.msra.mxu0 0.0
    %299 = vmatpush.msra.mxu0 0.0
    %300 = vmatpush.msra.mxu0 0.0
    %301 = vmatpush.msra.mxu0 0.0
    %302 = vmatpush.msra.mxu0 0.0
    %303 = vmatpush.msra.mxu0 0.0
    %304 = vmatpush.msra.mxu0 0.0
    %305 = vmatpush.msra.mxu0 0.0
    %306 = vmatpush.msra.mxu0 0.0
    %307 = vmatpush.msra.mxu0 0.0
    %308 = vmatpush.msra.mxu0 0.0
    %309 = vmatpush.msra.mxu0 0.0
    %310 = vmatpush.msra.mxu0 0.0
    %311 = vmatpush.msra.mxu0 %v87
    %312 = vmatmul.f32.gmra.mxu0 %v273
    %v313 = vpop.f32.mrf.mxu0
    %v314 = vadd.f32 %v270, %v313
    %315 = vmatmul.f32.gmra.mxu0 %v276
    %v316 = vpop.f32.mrf.mxu0
    %v317 = vadd.f32 %v270, %v316
    %318 = vmatmul.f32.gmra.mxu0 %v279
    %v319 = vpop.f32.mrf.mxu0
    %v320 = vadd.f32 %v270, %v319
    %321 = vmatmul.f32.gmra.mxu0 %v282
    %v322 = vpop.f32.mrf.mxu0
    %v323 = vadd.f32 %v270, %v322
    %324 = vmatmul.f32.gmra.mxu0 %v285
    %v325 = vpop.f32.mrf.mxu0
    %v326 = vadd.f32 %v270, %v325
    %327 = vmatmul.f32.gmra.mxu0 %v288
    %v328 = vpop.f32.mrf.mxu0
    %v329 = vadd.f32 %v270, %v328
    %330 = vmatmul.f32.gmra.mxu0 %v291
    %v331 = vpop.f32.mrf.mxu0
    %v332 = vadd.f32 %v270, %v331
    %333 = vmatmul.f32.gmra.mxu0 %v294
    %v334 = vpop.f32.mrf.mxu0
    %v335 = vadd.f32 %v270, %v334
    %336 = vdwg.mxu0
    %vm337 = vcmask 261120
    %v338 = vsel %vm337, %v314, 0.0
    %339 = vadd.xlane.f32.xlu0 %v338
    %v340 = vpop.xlane.xlu0 %339
    %v341 = vsel %vm337, %v317, 0.0
    %342 = vadd.xlane.f32.xlu0 %v341
    %v343 = vpop.xlane.xlu0 %342
    %v344 = vsel %vm337, %v320, 0.0
    %345 = vadd.xlane.f32.xlu0 %v344
    %v346 = vpop.xlane.xlu0 %345
    %v347 = vsel %vm337, %v323, 0.0
    %348 = vadd.xlane.f32.xlu0 %v347
    %v349 = vpop.xlane.xlu0 %348
    %v350 = vsel %vm337, %v326, 0.0
    %351 = vadd.xlane.f32.xlu0 %v350
    %v352 = vpop.xlane.xlu0 %351
    %v353 = vsel %vm337, %v329, 0.0
    %354 = vadd.xlane.f32.xlu0 %v353
    %v355 = vpop.xlane.xlu0 %354
    %v356 = vsel %vm337, %v332, 0.0
    %357 = vadd.xlane.f32.xlu0 %v356
    %v358 = vpop.xlane.xlu0 %357
    %v359 = vsel %vm337, %v335, 0.0
    %360 = vadd.xlane.f32.xlu0 %v359
    %v361 = vpop.xlane.xlu0 %360
    %v362 = vrcp.pop 32.0
    %v363 = vmul.f32 32.0, %v362
    %v364 = vsub.f32 1.0, %v363
    %v365 = vmul.f32 %v362, %v364
    %v366 = vadd.f32 %v362, %v365
    %vm367 = vweird.f32 %v362
    %v368 = vsel %vm367, %v362, %v366
    %v369 = vmul.f32 %v340, %v368
    %v370 = vmul.f32 %v343, %v368
    %v371 = vmul.f32 %v346, %v368
    %v372 = vmul.f32 %v349, %v368
    %v373 = vmul.f32 %v352, %v368
    %v374 = vmul.f32 %v355, %v368
    %v375 = vmul.f32 %v358, %v368
    %v376 = vmul.f32 %v361, %v368
    %v377 = vmul.f32 %v314, %v314
    %v378 = vmul.f32 %v317, %v317
    %v379 = vmul.f32 %v320, %v320
    %v380 = vmul.f32 %v323, %v323
    %v381 = vmul.f32 %v326, %v326
    %v382 = vmul.f32 %v329, %v329
    %v383 = vmul.f32 %v332, %v332
    %v384 = vmul.f32 %v335, %v335
    %v385 = vsel %vm337, %v377, 0.0
    %386 = vadd.xlane.f32.xlu0 %v385
    %v387 = vpop.xlane.xlu0 %386
    %v388 = vsel %vm337, %v378, 0.0
    %389 = vadd.xlane.f32.xlu0 %v388
    %v390 = vpop.xlane.xlu0 %389
    %v391 = vsel %vm337, %v379, 0.0
    %392 = vadd.xlane.f32.xlu0 %v391
    %v393 = vpop.xlane.xlu0 %392
    %v394 = vsel %vm337, %v380, 0.0
    %395 = vadd.xlane.f32.xlu0 %v394
    %v396 = vpop.xlane.xlu0 %395
    %v397 = vsel %vm337, %v381, 0.0
    %398 = vadd.xlane.f32.xlu0 %v397
    %v399 = vpop.xlane.xlu0 %398
    %v400 = vsel %vm337, %v382, 0.0
    %401 = vadd.xlane.f32.xlu0 %v400
    %v402 = vpop.xlane.xlu0 %401
    %v403 = vsel %vm337, %v383, 0.0
    %404 = vadd.xlane.f32.xlu0 %v403
    %v405 = vpop.xlane.xlu0 %404
    %v406 = vsel %vm337, %v384, 0.0
    %407 = vadd.xlane.f32.xlu0 %v406
    %v408 = vpop.xlane.xlu0 %407
    %v409 = vmul.f32 %v387, %v368
    %v410 = vmul.f32 %v390, %v368
    %v411 = vmul.f32 %v393, %v368
    %v412 = vmul.f32 %v396, %v368
    %v413 = vmul.f32 %v399, %v368
    %v414 = vmul.f32 %v402, %v368
    %v415 = vmul.f32 %v405, %v368
    %v416 = vmul.f32 %v408, %v368
    %v417 = vmul.f32 %v369, %v369
    %v418 = vmul.f32 %v370, %v370
    %v419 = vmul.f32 %v371, %v371
    %v420 = vmul.f32 %v372, %v372
    %v421 = vmul.f32 %v373, %v373
    %v422 = vmul.f32 %v374, %v374
    %v423 = vmul.f32 %v375, %v375
    %v424 = vmul.f32 %v376, %v376
    %v425 = vsub.f32 %v409, %v417
    %v426 = vsub.f32 %v410, %v418
    %v427 = vsub.f32 %v411, %v419
    %v428 = vsub.f32 %v412, %v420
    %v429 = vsub.f32 %v413, %v421
    %v430 = vsub.f32 %v414, %v422
    %v431 = vsub.f32 %v415, %v423
    %v432 = vsub.f32 %v416, %v424
    %v433 = vmax.f32 %v425, 0.0
    %v434 = vmax.f32 %v426, 0.0
    %v435 = vmax.f32 %v427, 0.0
    %v436 = vmax.f32 %v428, 0.0
    %v437 = vmax.f32 %v429, 0.0
    %v438 = vmax.f32 %v430, 0.0
    %v439 = vmax.f32 %v431, 0.0
    %v440 = vmax.f32 %v432, 0.0
    %v441 = vsub.f32 %v314, %v369
    %v442 = vsub.f32 %v317, %v370
    %v443 = vsub.f32 %v320, %v371
    %v444 = vsub.f32 %v323, %v372
    %v445 = vsub.f32 %v326, %v373
    %v446 = vsub.f32 %v329, %v374
    %v447 = vsub.f32 %v332, %v375
    %v448 = vsub.f32 %v335, %v376
    %v449 = vadd.f32 %v433, 1e-05
    %v450 = vadd.f32 %v434, 1e-05
    %v451 = vadd.f32 %v435, 1e-05
    %v452 = vadd.f32 %v436, 1e-05
    %v453 = vadd.f32 %v437, 1e-05
    %v454 = vadd.f32 %v438, 1e-05
    %v455 = vadd.f32 %v439, 1e-05
    %v456 = vadd.f32 %v440, 1e-05
    %v457 = vrsqrt.pop %v449
    %v458 = vmul.f32 %v457, %v449
    %v459 = vmul.f32 %v458, %v457
    %v460 = vmul.f32 0.5, %v459
    %v461 = vsub.f32 1.5, %v460
    %v462 = vmul.f32 %v457, %v461
    %vm463 = vweird.f32 %v449
    %vm464 = vweird.f32 %v457
    %vm465 = vmor %vm463, %vm464
    %v466 = vsel %vm465, %v457, %v462
    %v467 = vrsqrt.pop %v450
    %v468 = vmul.f32 %v467, %v450
    %v469 = vmul.f32 %v468, %v467
    %v470 = vmul.f32 0.5, %v469
    %v471 = vsub.f32 1.5, %v470
    %v472 = vmul.f32 %v467, %v471
    %vm473 = vweird.f32 %v450
    %vm474 = vweird.f32 %v467
    %vm475 = vmor %vm473, %vm474
    %v476 = vsel %vm475, %v467, %v472
    %v477 = vrsqrt.pop %v451
    %v478 = vmul.f32 %v477, %v451
    %v479 = vmul.f32 %v478, %v477
    %v480 = vmul.f32 0.5, %v479
    %v481 = vsub.f32 1.5, %v480
    %v482 = vmul.f32 %v477, %v481
    %vm483 = vweird.f32 %v451
    %vm484 = vweird.f32 %v477
    %vm485 = vmor %vm483, %vm484
    %v486 = vsel %vm485, %v477, %v482
    %v487 = vrsqrt.pop %v452
    %v488 = vmul.f32 %v487, %v452
    %v489 = vmul.f32 %v488, %v487
    %v490 = vmul.f32 0.5, %v489
    %v491 = vsub.f32 1.5, %v490
    %v492 = vmul.f32 %v487, %v491
    %vm493 = vweird.f32 %v452
    %vm494 = vweird.f32 %v487
    %vm495 = vmor %vm493, %vm494
    %v496 = vsel %vm495, %v487, %v492
    %v497 = vrsqrt.pop %v453
    %v498 = vmul.f32 %v497, %v453
    %v499 = vmul.f32 %v498, %v497
    %v500 = vmul.f32 0.5, %v499
    %v501 = vsub.f32 1.5, %v500
    %v502 = vmul.f32 %v497, %v501
    %vm503 = vweird.f32 %v453
    %vm504 = vweird.f32 %v497
    %vm505 = vmor %vm503, %vm504
    %v506 = vsel %vm505, %v497, %v502
    %v507 = vrsqrt.pop %v454
    %v508 = vmul.f32 %v507, %v454
    %v509 = vmul.f32 %v508, %v507
    %v510 = vmul.f32 0.5, %v509
    %v511 = vsub.f32 1.5, %v510
    %v512 = vmul.f32 %v507, %v511
    %vm513 = vweird.f32 %v454
    %vm514 = vweird.f32 %v507
    %vm515 = vmor %vm513, %vm514
    %v516 = vsel %vm515, %v507, %v512
    %v517 = vrsqrt.pop %v455
    %v518 = vmul.f32 %v517, %v455
    %v519 = vmul.f32 %v518, %v517
    %v520 = vmul.f32 0.5, %v519
    %v521 = vsub.f32 1.5, %v520
    %v522 = vmul.f32 %v517, %v521
    %vm523 = vweird.f32 %v455
    %vm524 = vweird.f32 %v517
    %vm525 = vmor %vm523, %vm524
    %v526 = vsel %vm525, %v517, %v522
    %v527 = vrsqrt.pop %v456
    %v528 = vmul.f32 %v527, %v456
    %v529 = vmul.f32 %v528, %v527
    %v530 = vmul.f32 0.5, %v529
    %v531 = vsub.f32 1.5, %v530
    %v532 = vmul.f32 %v527, %v531
    %vm533 = vweird.f32 %v456
    %vm534 = vweird.f32 %v527
    %vm535 = vmor %vm533, %vm534
    %v536 = vsel %vm535, %v527, %v532
    %v537 = vmul.f32 %v441, %v466
    %v538 = vmul.f32 %v442, %v476
    %v539 = vmul.f32 %v443, %v486
    %v540 = vmul.f32 %v444, %v496
    %v541 = vmul.f32 %v445, %v506
    %v542 = vmul.f32 %v446, %v516
    %v543 = vmul.f32 %v447, %v526
    %v544 = vmul.f32 %v448, %v536
    %v545 = vperm.slane %v132, 1
    %v546 = vmul.f32 %v537, %v545
    %v547 = vmul.f32 %v538, %v545
    %v548 = vmul.f32 %v539, %v545
    %v549 = vmul.f32 %v540, %v545
    %v550 = vmul.f32 %v541, %v545
    %v551 = vmul.f32 %v542, %v545
    %v552 = vmul.f32 %v543, %v545
    %v553 = vmul.f32 %v544, %v545
    %v554 = vperm.slane %v132, 2
    %v555 = vadd.f32 %v546, %v554
    %v556 = vadd.f32 %v547, %v554
    %v557 = vadd.f32 %v548, %v554
    %v558 = vadd.f32 %v549, %v554
    %v559 = vadd.f32 %v550, %v554
    %v560 = vadd.f32 %v551, %v554
    %v561 = vadd.f32 %v552, %v554
    %v562 = vadd.f32 %v553, %v554
    %v563 = vmul.f32 %v555, %v555
    %v564 = vmul.f32 %v556, %v556
    %v565 = vmul.f32 %v557, %v557
    %v566 = vmul.f32 %v558, %v558
    %v567 = vmul.f32 %v559, %v559
    %v568 = vmul.f32 %v560, %v560
    %v569 = vmul.f32 %v561, %v561
    %v570 = vmul.f32 %v562, %v562
    %v571 = vmul.f32 %v563, %v555
    %v572 = vmul.f32 %v564, %v556
    %v573 = vmul.f32 %v565, %v557
    %v574 = vmul.f32 %v566, %v558
    %v575 = vmul.f32 %v567, %v559
    %v576 = vmul.f32 %v568, %v560
    %v577 = vmul.f32 %v569, %v561
    %v578 = vmul.f32 %v570, %v562
    %587 = vrot.lane.b32.xlu0 %v563, 32
    %v588 = vpop.permute.xlu0 %587
    %589 = vrot.lane.b32.xlu0 %v564, 32
    %v590 = vpop.permute.xlu0 %589
    %591 = vrot.lane.b32.xlu0 %v565, 32
    %v592 = vpop.permute.xlu0 %591
    %593 = vrot.lane.b32.xlu0 %v566, 32
    %v594 = vpop.permute.xlu0 %593
    %595 = vrot.lane.b32.xlu0 %v567, 32
    %v596 = vpop.permute.xlu0 %595
    %597 = vrot.lane.b32.xlu0 %v568, 32
    %v598 = vpop.permute.xlu0 %597
    %599 = vrot.lane.b32.xlu0 %v569, 32
    %v600 = vpop.permute.xlu0 %599
    %601 = vrot.lane.b32.xlu0 %v570, 32
    %v602 = vpop.permute.xlu0 %601
    %619 = vrot.lane.b32.xlu0 %v571, 64
    %v620 = vpop.permute.xlu0 %619
    %621 = vrot.lane.b32.xlu0 %v572, 64
    %v622 = vpop.permute.xlu0 %621
    %623 = vrot.lane.b32.xlu0 %v573, 64
    %v624 = vpop.permute.xlu0 %623
    %625 = vrot.lane.b32.xlu0 %v574, 64
    %v626 = vpop.permute.xlu0 %625
    %627 = vrot.lane.b32.xlu0 %v575, 64
    %v628 = vpop.permute.xlu0 %627
    %629 = vrot.lane.b32.xlu0 %v576, 64
    %v630 = vpop.permute.xlu0 %629
    %631 = vrot.lane.b32.xlu0 %v577, 64
    %v632 = vpop.permute.xlu0 %631
    %633 = vrot.lane.b32.xlu0 %v578, 64
    %v634 = vpop.permute.xlu0 %633
    %v643 = vsel %vm337, %v555, %v588
    %v644 = vsel %vm337, %v556, %v590
    %v645 = vsel %vm337, %v557, %v592
    %v646 = vsel %vm337, %v558, %v594
    %v647 = vsel %vm337, %v559, %v596
    %v648 = vsel %vm337, %v560, %v598
    %v649 = vsel %vm337, %v561, %v600
    %v650 = vsel %vm337, %v562, %v602
    %vm651 = vcmask 523264
    %v652 = vsel %vm651, %v643, %v620
    %v653 = vsel %vm651, %v644, %v622
    %v654 = vsel %vm651, %v645, %v624
    %v655 = vsel %vm651, %v646, %v626
    %v656 = vsel %vm651, %v647, %v628
    %v657 = vsel %vm651, %v648, %v630
    %v658 = vsel %vm651, %v649, %v632
    %v659 = vsel %vm651, %v650, %v634
    %vm660 = vcmask 785408
    %v662 = vsel %vm660, %v652, 0
    %v665 = vsel %vm660, %v653, 0
    %v668 = vsel %vm660, %v654, 0
    %v671 = vsel %vm660, %v655, 0
    %v674 = vsel %vm660, %v656, 0
    %v677 = vsel %vm660, %v657, 0
    %v680 = vsel %vm660, %v658, 0
    %v683 = vsel %vm660, %v659, 0
    %685 = vmatpush.msra.mxu0 0.0
    %686 = vmatpush.msra.mxu0 0.0
    %687 = vmatpush.msra.mxu0 0.0
    %688 = vmatpush.msra.mxu0 0.0
    %689 = vmatpush.msra.mxu0 %v155
    %690 = vmatpush.msra.mxu0 %v153
    %691 = vmatpush.msra.mxu0 %v151
    %692 = vmatpush.msra.mxu0 %v149
    %693 = vmatpush.msra.mxu0 %v147
    %694 = vmatpush.msra.mxu0 %v145
    %695 = vmatpush.msra.mxu0 %v143
    %696 = vmatpush.msra.mxu0 %v141
    %697 = vmatpush.msra.mxu0 %v139
    %698 = vmatpush.msra.mxu0 %v137
    %699 = vmatpush.msra.mxu0 %v135
    %700 = vmatpush.msra.mxu0 %v133
    %701 = vmatmul.f32.gmra.mxu0 %v662
    %v702 = vpop.f32.mrf.mxu0
    %v703 = vadd.f32 0.0, %v702
    %704 = vmatmul.f32.gmra.mxu0 %v665
    %v705 = vpop.f32.mrf.mxu0
    %v706 = vadd.f32 0.0, %v705
    %707 = vmatmul.f32.gmra.mxu0 %v668
    %v708 = vpop.f32.mrf.mxu0
    %v709 = vadd.f32 0.0, %v708
    %710 = vmatmul.f32.gmra.mxu0 %v671
    %v711 = vpop.f32.mrf.mxu0
    %v712 = vadd.f32 0.0, %v711
    %713 = vmatmul.f32.gmra.mxu0 %v674
    %v714 = vpop.f32.mrf.mxu0
    %v715 = vadd.f32 0.0, %v714
    %716 = vmatmul.f32.gmra.mxu0 %v677
    %v717 = vpop.f32.mrf.mxu0
    %v718 = vadd.f32 0.0, %v717
    %719 = vmatmul.f32.gmra.mxu0 %v680
    %v720 = vpop.f32.mrf.mxu0
    %v721 = vadd.f32 0.0, %v720
    %722 = vmatmul.f32.gmra.mxu0 %v683
    %v723 = vpop.f32.mrf.mxu0
    %v724 = vadd.f32 0.0, %v723
    %725 = vdwg.mxu0
    %726 = vmatpush.msra.mxu0 0.0
    %727 = vmatpush.msra.mxu0 0.0
    %728 = vmatpush.msra.mxu0 0.0
    %729 = vmatpush.msra.mxu0 0.0
    %730 = vmatpush.msra.mxu0 %v156
    %731 = vmatpush.msra.mxu0 %v154
    %732 = vmatpush.msra.mxu0 %v152
    %733 = vmatpush.msra.mxu0 %v150
    %734 = vmatpush.msra.mxu0 %v148
    %735 = vmatpush.msra.mxu0 %v146
    %736 = vmatpush.msra.mxu0 %v144
    %737 = vmatpush.msra.mxu0 %v142
    %738 = vmatpush.msra.mxu0 %v140
    %739 = vmatpush.msra.mxu0 %v138
    %740 = vmatpush.msra.mxu0 %v136
    %741 = vmatpush.msra.mxu0 %v134
    %742 = vmatmul.f32.gmra.mxu0 %v662
    %v743 = vpop.f32.mrf.mxu0
    %v744 = vadd.f32 0.0, %v743
    %745 = vmatmul.f32.gmra.mxu0 %v665
    %v746 = vpop.f32.mrf.mxu0
    %v747 = vadd.f32 0.0, %v746
    %748 = vmatmul.f32.gmra.mxu0 %v668
    %v749 = vpop.f32.mrf.mxu0
    %v750 = vadd.f32 0.0, %v749
    %751 = vmatmul.f32.gmra.mxu0 %v671
    %v752 = vpop.f32.mrf.mxu0
    %v753 = vadd.f32 0.0, %v752
    %754 = vmatmul.f32.gmra.mxu0 %v674
    %v755 = vpop.f32.mrf.mxu0
    %v756 = vadd.f32 0.0, %v755
    %757 = vmatmul.f32.gmra.mxu0 %v677
    %v758 = vpop.f32.mrf.mxu0
    %v759 = vadd.f32 0.0, %v758
    %760 = vmatmul.f32.gmra.mxu0 %v680
    %v761 = vpop.f32.mrf.mxu0
    %v762 = vadd.f32 0.0, %v761
    %763 = vmatmul.f32.gmra.mxu0 %v683
    %v764 = vpop.f32.mrf.mxu0
    %v765 = vadd.f32 0.0, %v764
    %766 = vdwg.mxu0
    %768 = vset.pattern.permute.xlu0 0
    %769 = vperm.xlu0 %768, %v262
    %v770 = vpop.permute.xlu0 %769
    %773 = vset.pattern.permute.xlu0 0
    %774 = vperm.xlu0 %773, %v263
    %v775 = vpop.permute.xlu0 %774
    %778 = vset.pattern.permute.xlu0 0
    %779 = vperm.xlu0 %778, %v264
    %v780 = vpop.permute.xlu0 %779
    %783 = vset.pattern.permute.xlu0 0
    %784 = vperm.xlu0 %783, %v265
    %v785 = vpop.permute.xlu0 %784
    %788 = vset.pattern.permute.xlu0 0
    %789 = vperm.xlu0 %788, %v266
    %v790 = vpop.permute.xlu0 %789
    %793 = vset.pattern.permute.xlu0 0
    %794 = vperm.xlu0 %793, %v267
    %v795 = vpop.permute.xlu0 %794
    %798 = vset.pattern.permute.xlu0 0
    %799 = vperm.xlu0 %798, %v268
    %v800 = vpop.permute.xlu0 %799
    %803 = vset.pattern.permute.xlu0 0
    %804 = vperm.xlu0 %803, %v269
    %v805 = vpop.permute.xlu0 %804
    %v807 = vperm.slane %v744, 0
    %v808 = vperm.slane %v747, 0
    %v809 = vperm.slane %v750, 0
    %v810 = vperm.slane %v753, 0
    %v811 = vperm.slane %v756, 0
    %v812 = vperm.slane %v759, 0
    %v813 = vperm.slane %v762, 0
    %v814 = vperm.slane %v765, 0
    %v815 = vmul.f32 %v770, %v807
    %v816 = vmul.f32 %v775, %v808
    %v817 = vmul.f32 %v780, %v809
    %v818 = vmul.f32 %v785, %v810
    %v819 = vmul.f32 %v790, %v811
    %v820 = vmul.f32 %v795, %v812
    %v821 = vmul.f32 %v800, %v813
    %v822 = vmul.f32 %v805, %v814
    %823 = vset.pattern.permute.xlu0 1
    %824 = vperm.xlu0 %823, %v262
    %v825 = vpop.permute.xlu0 %824
    %827 = vset.pattern.permute.xlu0 1
    %828 = vperm.xlu0 %827, %v263
    %v829 = vpop.permute.xlu0 %828
    %831 = vset.pattern.permute.xlu0 1
    %832 = vperm.xlu0 %831, %v264
    %v833 = vpop.permute.xlu0 %832
    %835 = vset.pattern.permute.xlu0 1
    %836 = vperm.xlu0 %835, %v265
    %v837 = vpop.permute.xlu0 %836
    %839 = vset.pattern.permute.xlu0 1
    %840 = vperm.xlu0 %839, %v266
    %v841 = vpop.permute.xlu0 %840
    %843 = vset.pattern.permute.xlu0 1
    %844 = vperm.xlu0 %843, %v267
    %v845 = vpop.permute.xlu0 %844
    %847 = vset.pattern.permute.xlu0 1
    %848 = vperm.xlu0 %847, %v268
    %v849 = vpop.permute.xlu0 %848
    %851 = vset.pattern.permute.xlu0 1
    %852 = vperm.xlu0 %851, %v269
    %v853 = vpop.permute.xlu0 %852
    %v855 = vperm.slane %v744, 1
    %v856 = vperm.slane %v747, 1
    %v857 = vperm.slane %v750, 1
    %v858 = vperm.slane %v753, 1
    %v859 = vperm.slane %v756, 1
    %v860 = vperm.slane %v759, 1
    %v861 = vperm.slane %v762, 1
    %v862 = vperm.slane %v765, 1
    %v863 = vmul.f32 %v825, %v855
    %v864 = vmul.f32 %v829, %v856
    %v865 = vmul.f32 %v833, %v857
    %v866 = vmul.f32 %v837, %v858
    %v867 = vmul.f32 %v841, %v859
    %v868 = vmul.f32 %v845, %v860
    %v869 = vmul.f32 %v849, %v861
    %v870 = vmul.f32 %v853, %v862
    %v871 = vadd.f32 %v815, %v863
    %v872 = vadd.f32 %v816, %v864
    %v873 = vadd.f32 %v817, %v865
    %v874 = vadd.f32 %v818, %v866
    %v875 = vadd.f32 %v819, %v867
    %v876 = vadd.f32 %v820, %v868
    %v877 = vadd.f32 %v821, %v869
    %v878 = vadd.f32 %v822, %v870
    %879 = vset.pattern.permute.xlu0 2
    %880 = vperm.xlu0 %879, %v262
    %v881 = vpop.permute.xlu0 %880
    %883 = vset.pattern.permute.xlu0 2
    %884 = vperm.xlu0 %883, %v263
    %v885 = vpop.permute.xlu0 %884
    %887 = vset.pattern.permute.xlu0 2
    %888 = vperm.xlu0 %887, %v264
    %v889 = vpop.permute.xlu0 %888
    %891 = vset.pattern.permute.xlu0 2
    %892 = vperm.xlu0 %891, %v265
    %v893 = vpop.permute.xlu0 %892
    %895 = vset.pattern.permute.xlu0 2
    %896 = vperm.xlu0 %895, %v266
    %v897 = vpop.permute.xlu0 %896
    %899 = vset.pattern.permute.xlu0 2
    %900 = vperm.xlu0 %899, %v267
    %v901 = vpop.permute.xlu0 %900
    %903 = vset.pattern.permute.xlu0 2
    %904 = vperm.xlu0 %903, %v268
    %v905 = vpop.permute.xlu0 %904
    %907 = vset.pattern.permute.xlu0 2
    %908 = vperm.xlu0 %907, %v269
    %v909 = vpop.permute.xlu0 %908
    %v911 = vperm.slane %v744, 2
    %v912 = vperm.slane %v747, 2
    %v913 = vperm.slane %v750, 2
    %v914 = vperm.slane %v753, 2
    %v915 = vperm.slane %v756, 2
    %v916 = vperm.slane %v759, 2
    %v917 = vperm.slane %v762, 2
    %v918 = vperm.slane %v765, 2
    %v919 = vmul.f32 %v881, %v911
    %v920 = vmul.f32 %v885, %v912
    %v921 = vmul.f32 %v889, %v913
    %v922 = vmul.f32 %v893, %v914
    %v923 = vmul.f32 %v897, %v915
    %v924 = vmul.f32 %v901, %v916
    %v925 = vmul.f32 %v905, %v917
    %v926 = vmul.f32 %v909, %v918
    %v927 = vadd.f32 %v871, %v919
    %v928 = vadd.f32 %v872, %v920
    %v929 = vadd.f32 %v873, %v921
    %v930 = vadd.f32 %v874, %v922
    %v931 = vadd.f32 %v875, %v923
    %v932 = vadd.f32 %v876, %v924
    %v933 = vadd.f32 %v877, %v925
    %v934 = vadd.f32 %v878, %v926
    %935 = vset.pattern.permute.xlu0 3
    %936 = vperm.xlu0 %935, %v262
    %v937 = vpop.permute.xlu0 %936
    %939 = vset.pattern.permute.xlu0 3
    %940 = vperm.xlu0 %939, %v263
    %v941 = vpop.permute.xlu0 %940
    %943 = vset.pattern.permute.xlu0 3
    %944 = vperm.xlu0 %943, %v264
    %v945 = vpop.permute.xlu0 %944
    %947 = vset.pattern.permute.xlu0 3
    %948 = vperm.xlu0 %947, %v265
    %v949 = vpop.permute.xlu0 %948
    %951 = vset.pattern.permute.xlu0 3
    %952 = vperm.xlu0 %951, %v266
    %v953 = vpop.permute.xlu0 %952
    %955 = vset.pattern.permute.xlu0 3
    %956 = vperm.xlu0 %955, %v267
    %v957 = vpop.permute.xlu0 %956
    %959 = vset.pattern.permute.xlu0 3
    %960 = vperm.xlu0 %959, %v268
    %v961 = vpop.permute.xlu0 %960
    %963 = vset.pattern.permute.xlu0 3
    %964 = vperm.xlu0 %963, %v269
    %v965 = vpop.permute.xlu0 %964
    %v967 = vperm.slane %v744, 3
    %v968 = vperm.slane %v747, 3
    %v969 = vperm.slane %v750, 3
    %v970 = vperm.slane %v753, 3
    %v971 = vperm.slane %v756, 3
    %v972 = vperm.slane %v759, 3
    %v973 = vperm.slane %v762, 3
    %v974 = vperm.slane %v765, 3
    %v975 = vmul.f32 %v937, %v967
    %v976 = vmul.f32 %v941, %v968
    %v977 = vmul.f32 %v945, %v969
    %v978 = vmul.f32 %v949, %v970
    %v979 = vmul.f32 %v953, %v971
    %v980 = vmul.f32 %v957, %v972
    %v981 = vmul.f32 %v961, %v973
    %v982 = vmul.f32 %v965, %v974
    %v983 = vadd.f32 %v927, %v975
    %v984 = vadd.f32 %v928, %v976
    %v985 = vadd.f32 %v929, %v977
    %v986 = vadd.f32 %v930, %v978
    %v987 = vadd.f32 %v931, %v979
    %v988 = vadd.f32 %v932, %v980
    %v989 = vadd.f32 %v933, %v981
    %v990 = vadd.f32 %v934, %v982
    %991 = vset.pattern.permute.xlu0 4
    %992 = vperm.xlu0 %991, %v262
    %v993 = vpop.permute.xlu0 %992
    %995 = vset.pattern.permute.xlu0 4
    %996 = vperm.xlu0 %995, %v263
    %v997 = vpop.permute.xlu0 %996
    %999 = vset.pattern.permute.xlu0 4
    %1000 = vperm.xlu0 %999, %v264
    %v1001 = vpop.permute.xlu0 %1000
    %1003 = vset.pattern.permute.xlu0 4
    %1004 = vperm.xlu0 %1003, %v265
    %v1005 = vpop.permute.xlu0 %1004
    %1007 = vset.pattern.permute.xlu0 4
    %1008 = vperm.xlu0 %1007, %v266
    %v1009 = vpop.permute.xlu0 %1008
    %1011 = vset.pattern.permute.xlu0 4
    %1012 = vperm.xlu0 %1011, %v267
    %v1013 = vpop.permute.xlu0 %1012
    %1015 = vset.pattern.permute.xlu0 4
    %1016 = vperm.xlu0 %1015, %v268
    %v1017 = vpop.permute.xlu0 %1016
    %1019 = vset.pattern.permute.xlu0 4
    %1020 = vperm.xlu0 %1019, %v269
    %v1021 = vpop.permute.xlu0 %1020
    %v1023 = vperm.slane %v744, 4
    %v1024 = vperm.slane %v747, 4
    %v1025 = vperm.slane %v750, 4
    %v1026 = vperm.slane %v753, 4
    %v1027 = vperm.slane %v756, 4
    %v1028 = vperm.slane %v759, 4
    %v1029 = vperm.slane %v762, 4
    %v1030 = vperm.slane %v765, 4
    %v1031 = vmul.f32 %v993, %v1023
    %v1032 = vmul.f32 %v997, %v1024
    %v1033 = vmul.f32 %v1001, %v1025
    %v1034 = vmul.f32 %v1005, %v1026
    %v1035 = vmul.f32 %v1009, %v1027
    %v1036 = vmul.f32 %v1013, %v1028
    %v1037 = vmul.f32 %v1017, %v1029
    %v1038 = vmul.f32 %v1021, %v1030
    %v1039 = vadd.f32 %v983, %v1031
    %v1040 = vadd.f32 %v984, %v1032
    %v1041 = vadd.f32 %v985, %v1033
    %v1042 = vadd.f32 %v986, %v1034
    %v1043 = vadd.f32 %v987, %v1035
    %v1044 = vadd.f32 %v988, %v1036
    %v1045 = vadd.f32 %v989, %v1037
    %v1046 = vadd.f32 %v990, %v1038
    %1047 = vset.pattern.permute.xlu0 5
    %1048 = vperm.xlu0 %1047, %v262
    %v1049 = vpop.permute.xlu0 %1048
    %1051 = vset.pattern.permute.xlu0 5
    %1052 = vperm.xlu0 %1051, %v263
    %v1053 = vpop.permute.xlu0 %1052
    %1055 = vset.pattern.permute.xlu0 5
    %1056 = vperm.xlu0 %1055, %v264
    %v1057 = vpop.permute.xlu0 %1056
    %1059 = vset.pattern.permute.xlu0 5
    %1060 = vperm.xlu0 %1059, %v265
    %v1061 = vpop.permute.xlu0 %1060
    %1063 = vset.pattern.permute.xlu0 5
    %1064 = vperm.xlu0 %1063, %v266
    %v1065 = vpop.permute.xlu0 %1064
    %1067 = vset.pattern.permute.xlu0 5
    %1068 = vperm.xlu0 %1067, %v267
    %v1069 = vpop.permute.xlu0 %1068
    %1071 = vset.pattern.permute.xlu0 5
    %1072 = vperm.xlu0 %1071, %v268
    %v1073 = vpop.permute.xlu0 %1072
    %1075 = vset.pattern.permute.xlu0 5
    %1076 = vperm.xlu0 %1075, %v269
    %v1077 = vpop.permute.xlu0 %1076
    %v1079 = vperm.slane %v744, 5
    %v1080 = vperm.slane %v747, 5
    %v1081 = vperm.slane %v750, 5
    %v1082 = vperm.slane %v753, 5
    %v1083 = vperm.slane %v756, 5
    %v1084 = vperm.slane %v759, 5
    %v1085 = vperm.slane %v762, 5
    %v1086 = vperm.slane %v765, 5
    %v1087 = vmul.f32 %v1049, %v1079
    %v1088 = vmul.f32 %v1053, %v1080
    %v1089 = vmul.f32 %v1057, %v1081
    %v1090 = vmul.f32 %v1061, %v1082
    %v1091 = vmul.f32 %v1065, %v1083
    %v1092 = vmul.f32 %v1069, %v1084
    %v1093 = vmul.f32 %v1073, %v1085
    %v1094 = vmul.f32 %v1077, %v1086
    %v1095 = vadd.f32 %v1039, %v1087
    %v1096 = vadd.f32 %v1040, %v1088
    %v1097 = vadd.f32 %v1041, %v1089
    %v1098 = vadd.f32 %v1042, %v1090
    %v1099 = vadd.f32 %v1043, %v1091
    %v1100 = vadd.f32 %v1044, %v1092
    %v1101 = vadd.f32 %v1045, %v1093
    %v1102 = vadd.f32 %v1046, %v1094
    %1103 = vset.pattern.permute.xlu0 6
    %1104 = vperm.xlu0 %1103, %v262
    %v1105 = vpop.permute.xlu0 %1104
    %1107 = vset.pattern.permute.xlu0 6
    %1108 = vperm.xlu0 %1107, %v263
    %v1109 = vpop.permute.xlu0 %1108
    %1111 = vset.pattern.permute.xlu0 6
    %1112 = vperm.xlu0 %1111, %v264
    %v1113 = vpop.permute.xlu0 %1112
    %1115 = vset.pattern.permute.xlu0 6
    %1116 = vperm.xlu0 %1115, %v265
    %v1117 = vpop.permute.xlu0 %1116
    %1119 = vset.pattern.permute.xlu0 6
    %1120 = vperm.xlu0 %1119, %v266
    %v1121 = vpop.permute.xlu0 %1120
    %1123 = vset.pattern.permute.xlu0 6
    %1124 = vperm.xlu0 %1123, %v267
    %v1125 = vpop.permute.xlu0 %1124
    %1127 = vset.pattern.permute.xlu0 6
    %1128 = vperm.xlu0 %1127, %v268
    %v1129 = vpop.permute.xlu0 %1128
    %1131 = vset.pattern.permute.xlu0 6
    %1132 = vperm.xlu0 %1131, %v269
    %v1133 = vpop.permute.xlu0 %1132
    %v1135 = vperm.slane %v744, 6
    %v1136 = vperm.slane %v747, 6
    %v1137 = vperm.slane %v750, 6
    %v1138 = vperm.slane %v753, 6
    %v1139 = vperm.slane %v756, 6
    %v1140 = vperm.slane %v759, 6
    %v1141 = vperm.slane %v762, 6
    %v1142 = vperm.slane %v765, 6
    %v1143 = vmul.f32 %v1105, %v1135
    %v1144 = vmul.f32 %v1109, %v1136
    %v1145 = vmul.f32 %v1113, %v1137
    %v1146 = vmul.f32 %v1117, %v1138
    %v1147 = vmul.f32 %v1121, %v1139
    %v1148 = vmul.f32 %v1125, %v1140
    %v1149 = vmul.f32 %v1129, %v1141
    %v1150 = vmul.f32 %v1133, %v1142
    %v1151 = vadd.f32 %v1095, %v1143
    %v1152 = vadd.f32 %v1096, %v1144
    %v1153 = vadd.f32 %v1097, %v1145
    %v1154 = vadd.f32 %v1098, %v1146
    %v1155 = vadd.f32 %v1099, %v1147
    %v1156 = vadd.f32 %v1100, %v1148
    %v1157 = vadd.f32 %v1101, %v1149
    %v1158 = vadd.f32 %v1102, %v1150
    %1159 = vset.pattern.permute.xlu0 7
    %1160 = vperm.xlu0 %1159, %v262
    %v1161 = vpop.permute.xlu0 %1160
    %1163 = vset.pattern.permute.xlu0 7
    %1164 = vperm.xlu0 %1163, %v263
    %v1165 = vpop.permute.xlu0 %1164
    %1167 = vset.pattern.permute.xlu0 7
    %1168 = vperm.xlu0 %1167, %v264
    %v1169 = vpop.permute.xlu0 %1168
    %1171 = vset.pattern.permute.xlu0 7
    %1172 = vperm.xlu0 %1171, %v265
    %v1173 = vpop.permute.xlu0 %1172
    %1175 = vset.pattern.permute.xlu0 7
    %1176 = vperm.xlu0 %1175, %v266
    %v1177 = vpop.permute.xlu0 %1176
    %1179 = vset.pattern.permute.xlu0 7
    %1180 = vperm.xlu0 %1179, %v267
    %v1181 = vpop.permute.xlu0 %1180
    %1183 = vset.pattern.permute.xlu0 7
    %1184 = vperm.xlu0 %1183, %v268
    %v1185 = vpop.permute.xlu0 %1184
    %1187 = vset.pattern.permute.xlu0 7
    %1188 = vperm.xlu0 %1187, %v269
    %v1189 = vpop.permute.xlu0 %1188
    %v1191 = vperm.slane %v744, 7
    %v1192 = vperm.slane %v747, 7
    %v1193 = vperm.slane %v750, 7
    %v1194 = vperm.slane %v753, 7
    %v1195 = vperm.slane %v756, 7
    %v1196 = vperm.slane %v759, 7
    %v1197 = vperm.slane %v762, 7
    %v1198 = vperm.slane %v765, 7
    %v1199 = vmul.f32 %v1161, %v1191
    %v1200 = vmul.f32 %v1165, %v1192
    %v1201 = vmul.f32 %v1169, %v1193
    %v1202 = vmul.f32 %v1173, %v1194
    %v1203 = vmul.f32 %v1177, %v1195
    %v1204 = vmul.f32 %v1181, %v1196
    %v1205 = vmul.f32 %v1185, %v1197
    %v1206 = vmul.f32 %v1189, %v1198
    %v1207 = vadd.f32 %v1151, %v1199
    %v1208 = vadd.f32 %v1152, %v1200
    %v1209 = vadd.f32 %v1153, %v1201
    %v1210 = vadd.f32 %v1154, %v1202
    %v1211 = vadd.f32 %v1155, %v1203
    %v1212 = vadd.f32 %v1156, %v1204
    %v1213 = vadd.f32 %v1157, %v1205
    %v1214 = vadd.f32 %v1158, %v1206
    %v1215 = vadd.f32 %v703, %v1207
    %v1216 = vadd.f32 %v706, %v1208
    %v1217 = vadd.f32 %v709, %v1209
    %v1218 = vadd.f32 %v712, %v1210
    %v1219 = vadd.f32 %v715, %v1211
    %v1220 = vadd.f32 %v718, %v1212
    %v1221 = vadd.f32 %v721, %v1213
    %v1222 = vadd.f32 %v724, %v1214
    %v1223 = vperm.slane %v253, 0
    %v1224 = vadd.f32 %v1215, %v1223
    %v1225 = vadd.f32 %v1216, %v1223
    %v1226 = vadd.f32 %v1217, %v1223
    %v1227 = vadd.f32 %v1218, %v1223
    %v1228 = vadd.f32 %v1219, %v1223
    %v1229 = vadd.f32 %v1220, %v1223
    %v1230 = vadd.f32 %v1221, %v1223
    %v1231 = vadd.f32 %v1222, %v1223
    %v1232 = vmax.f32 %v1224, 0.0
    %v1233 = vmax.f32 %v1225, 0.0
    %v1234 = vmax.f32 %v1226, 0.0
    %v1235 = vmax.f32 %v1227, 0.0
    %v1236 = vmax.f32 %v1228, 0.0
    %v1237 = vmax.f32 %v1229, 0.0
    %v1238 = vmax.f32 %v1230, 0.0
    %v1239 = vmax.f32 %v1231, 0.0
    %v1240 = vsel %vm660, %v1232, 0.0
    %1241 = vadd.xlane.f32.xlu0 %v1240
    %v1242 = vpop.xlane.xlu0 %1241
    %v1243 = vsel %vm660, %v1233, 0.0
    %1244 = vadd.xlane.f32.xlu0 %v1243
    %v1245 = vpop.xlane.xlu0 %1244
    %v1246 = vsel %vm660, %v1234, 0.0
    %1247 = vadd.xlane.f32.xlu0 %v1246
    %v1248 = vpop.xlane.xlu0 %1247
    %v1249 = vsel %vm660, %v1235, 0.0
    %1250 = vadd.xlane.f32.xlu0 %v1249
    %v1251 = vpop.xlane.xlu0 %1250
    %v1252 = vsel %vm660, %v1236, 0.0
    %1253 = vadd.xlane.f32.xlu0 %v1252
    %v1254 = vpop.xlane.xlu0 %1253
    %v1255 = vsel %vm660, %v1237, 0.0
    %1256 = vadd.xlane.f32.xlu0 %v1255
    %v1257 = vpop.xlane.xlu0 %1256
    %v1258 = vsel %vm660, %v1238, 0.0
    %1259 = vadd.xlane.f32.xlu0 %v1258
    %v1260 = vpop.xlane.xlu0 %1259
    %v1261 = vsel %vm660, %v1239, 0.0
    %1262 = vadd.xlane.f32.xlu0 %v1261
    %v1263 = vpop.xlane.xlu0 %1262
    %v1264 = vrcp.pop 96.0
    %v1265 = vmul.f32 96.0, %v1264
    %v1266 = vsub.f32 1.0, %v1265
    %v1267 = vmul.f32 %v1264, %v1266
    %v1268 = vadd.f32 %v1264, %v1267
    %vm1269 = vweird.f32 %v1264
    %v1270 = vsel %vm1269, %v1264, %v1268
    %v1271 = vmul.f32 %v1242, %v1270
    %v1272 = vmul.f32 %v1245, %v1270
    %v1273 = vmul.f32 %v1248, %v1270
    %v1274 = vmul.f32 %v1251, %v1270
    %v1275 = vmul.f32 %v1254, %v1270
    %v1276 = vmul.f32 %v1257, %v1270
    %v1277 = vmul.f32 %v1260, %v1270
    %v1278 = vmul.f32 %v1263, %v1270
    %v1279 = vmul.f32 %v1232, %v1232
    %v1280 = vmul.f32 %v1233, %v1233
    %v1281 = vmul.f32 %v1234, %v1234
    %v1282 = vmul.f32 %v1235, %v1235
    %v1283 = vmul.f32 %v1236, %v1236
    %v1284 = vmul.f32 %v1237, %v1237
    %v1285 = vmul.f32 %v1238, %v1238
    %v1286 = vmul.f32 %v1239, %v1239
    %v1287 = vsel %vm660, %v1279, 0.0
    %1288 = vadd.xlane.f32.xlu0 %v1287
    %v1289 = vpop.xlane.xlu0 %1288
    %v1290 = vsel %vm660, %v1280, 0.0
    %1291 = vadd.xlane.f32.xlu0 %v1290
    %v1292 = vpop.xlane.xlu0 %1291
    %v1293 = vsel %vm660, %v1281, 0.0
    %1294 = vadd.xlane.f32.xlu0 %v1293
    %v1295 = vpop.xlane.xlu0 %1294
    %v1296 = vsel %vm660, %v1282, 0.0
    %1297 = vadd.xlane.f32.xlu0 %v1296
    %v1298 = vpop.xlane.xlu0 %1297
    %v1299 = vsel %vm660, %v1283, 0.0
    %1300 = vadd.xlane.f32.xlu0 %v1299
    %v1301 = vpop.xlane.xlu0 %1300
    %v1302 = vsel %vm660, %v1284, 0.0
    %1303 = vadd.xlane.f32.xlu0 %v1302
    %v1304 = vpop.xlane.xlu0 %1303
    %v1305 = vsel %vm660, %v1285, 0.0
    %1306 = vadd.xlane.f32.xlu0 %v1305
    %v1307 = vpop.xlane.xlu0 %1306
    %v1308 = vsel %vm660, %v1286, 0.0
    %1309 = vadd.xlane.f32.xlu0 %v1308
    %v1310 = vpop.xlane.xlu0 %1309
    %v1311 = vmul.f32 %v1289, %v1270
    %v1312 = vmul.f32 %v1292, %v1270
    %v1313 = vmul.f32 %v1295, %v1270
    %v1314 = vmul.f32 %v1298, %v1270
    %v1315 = vmul.f32 %v1301, %v1270
    %v1316 = vmul.f32 %v1304, %v1270
    %v1317 = vmul.f32 %v1307, %v1270
    %v1318 = vmul.f32 %v1310, %v1270
    %v1319 = vmul.f32 %v1271, %v1271
    %v1320 = vmul.f32 %v1272, %v1272
    %v1321 = vmul.f32 %v1273, %v1273
    %v1322 = vmul.f32 %v1274, %v1274
    %v1323 = vmul.f32 %v1275, %v1275
    %v1324 = vmul.f32 %v1276, %v1276
    %v1325 = vmul.f32 %v1277, %v1277
    %v1326 = vmul.f32 %v1278, %v1278
    %v1327 = vsub.f32 %v1311, %v1319
    %v1328 = vsub.f32 %v1312, %v1320
    %v1329 = vsub.f32 %v1313, %v1321
    %v1330 = vsub.f32 %v1314, %v1322
    %v1331 = vsub.f32 %v1315, %v1323
    %v1332 = vsub.f32 %v1316, %v1324
    %v1333 = vsub.f32 %v1317, %v1325
    %v1334 = vsub.f32 %v1318, %v1326
    %v1335 = vmax.f32 %v1327, 0.0
    %v1336 = vmax.f32 %v1328, 0.0
    %v1337 = vmax.f32 %v1329, 0.0
    %v1338 = vmax.f32 %v1330, 0.0
    %v1339 = vmax.f32 %v1331, 0.0
    %v1340 = vmax.f32 %v1332, 0.0
    %v1341 = vmax.f32 %v1333, 0.0
    %v1342 = vmax.f32 %v1334, 0.0
    %v1343 = vsub.f32 %v1232, %v1271
    %v1344 = vsub.f32 %v1233, %v1272
    %v1345 = vsub.f32 %v1234, %v1273
    %v1346 = vsub.f32 %v1235, %v1274
    %v1347 = vsub.f32 %v1236, %v1275
    %v1348 = vsub.f32 %v1237, %v1276
    %v1349 = vsub.f32 %v1238, %v1277
    %v1350 = vsub.f32 %v1239, %v1278
    %v1351 = vadd.f32 %v1335, 1e-05
    %v1352 = vadd.f32 %v1336, 1e-05
    %v1353 = vadd.f32 %v1337, 1e-05
    %v1354 = vadd.f32 %v1338, 1e-05
    %v1355 = vadd.f32 %v1339, 1e-05
    %v1356 = vadd.f32 %v1340, 1e-05
    %v1357 = vadd.f32 %v1341, 1e-05
    %v1358 = vadd.f32 %v1342, 1e-05
    %v1359 = vrsqrt.pop %v1351
    %v1360 = vmul.f32 %v1359, %v1351
    %v1361 = vmul.f32 %v1360, %v1359
    %v1362 = vmul.f32 0.5, %v1361
    %v1363 = vsub.f32 1.5, %v1362
    %v1364 = vmul.f32 %v1359, %v1363
    %vm1365 = vweird.f32 %v1351
    %vm1366 = vweird.f32 %v1359
    %vm1367 = vmor %vm1365, %vm1366
    %v1368 = vsel %vm1367, %v1359, %v1364
    %v1369 = vrsqrt.pop %v1352
    %v1370 = vmul.f32 %v1369, %v1352
    %v1371 = vmul.f32 %v1370, %v1369
    %v1372 = vmul.f32 0.5, %v1371
    %v1373 = vsub.f32 1.5, %v1372
    %v1374 = vmul.f32 %v1369, %v1373
    %vm1375 = vweird.f32 %v1352
    %vm1376 = vweird.f32 %v1369
    %vm1377 = vmor %vm1375, %vm1376
    %v1378 = vsel %vm1377, %v1369, %v1374
    %v1379 = vrsqrt.pop %v1353
    %v1380 = vmul.f32 %v1379, %v1353
    %v1381 = vmul.f32 %v1380, %v1379
    %v1382 = vmul.f32 0.5, %v1381
    %v1383 = vsub.f32 1.5, %v1382
    %v1384 = vmul.f32 %v1379, %v1383
    %vm1385 = vweird.f32 %v1353
    %vm1386 = vweird.f32 %v1379
    %vm1387 = vmor %vm1385, %vm1386
    %v1388 = vsel %vm1387, %v1379, %v1384
    %v1389 = vrsqrt.pop %v1354
    %v1390 = vmul.f32 %v1389, %v1354
    %v1391 = vmul.f32 %v1390, %v1389
    %v1392 = vmul.f32 0.5, %v1391
    %v1393 = vsub.f32 1.5, %v1392
    %v1394 = vmul.f32 %v1389, %v1393
    %vm1395 = vweird.f32 %v1354
    %vm1396 = vweird.f32 %v1389
    %vm1397 = vmor %vm1395, %vm1396
    %v1398 = vsel %vm1397, %v1389, %v1394
    %v1399 = vrsqrt.pop %v1355
    %v1400 = vmul.f32 %v1399, %v1355
    %v1401 = vmul.f32 %v1400, %v1399
    %v1402 = vmul.f32 0.5, %v1401
    %v1403 = vsub.f32 1.5, %v1402
    %v1404 = vmul.f32 %v1399, %v1403
    %vm1405 = vweird.f32 %v1355
    %vm1406 = vweird.f32 %v1399
    %vm1407 = vmor %vm1405, %vm1406
    %v1408 = vsel %vm1407, %v1399, %v1404
    %v1409 = vrsqrt.pop %v1356
    %v1410 = vmul.f32 %v1409, %v1356
    %v1411 = vmul.f32 %v1410, %v1409
    %v1412 = vmul.f32 0.5, %v1411
    %v1413 = vsub.f32 1.5, %v1412
    %v1414 = vmul.f32 %v1409, %v1413
    %vm1415 = vweird.f32 %v1356
    %vm1416 = vweird.f32 %v1409
    %vm1417 = vmor %vm1415, %vm1416
    %v1418 = vsel %vm1417, %v1409, %v1414
    %v1419 = vrsqrt.pop %v1357
    %v1420 = vmul.f32 %v1419, %v1357
    %v1421 = vmul.f32 %v1420, %v1419
    %v1422 = vmul.f32 0.5, %v1421
    %v1423 = vsub.f32 1.5, %v1422
    %v1424 = vmul.f32 %v1419, %v1423
    %vm1425 = vweird.f32 %v1357
    %vm1426 = vweird.f32 %v1419
    %vm1427 = vmor %vm1425, %vm1426
    %v1428 = vsel %vm1427, %v1419, %v1424
    %v1429 = vrsqrt.pop %v1358
    %v1430 = vmul.f32 %v1429, %v1358
    %v1431 = vmul.f32 %v1430, %v1429
    %v1432 = vmul.f32 0.5, %v1431
    %v1433 = vsub.f32 1.5, %v1432
    %v1434 = vmul.f32 %v1429, %v1433
    %vm1435 = vweird.f32 %v1358
    %vm1436 = vweird.f32 %v1429
    %vm1437 = vmor %vm1435, %vm1436
    %v1438 = vsel %vm1437, %v1429, %v1434
    %v1439 = vmul.f32 %v1343, %v1368
    %v1440 = vmul.f32 %v1344, %v1378
    %v1441 = vmul.f32 %v1345, %v1388
    %v1442 = vmul.f32 %v1346, %v1398
    %v1443 = vmul.f32 %v1347, %v1408
    %v1444 = vmul.f32 %v1348, %v1418
    %v1445 = vmul.f32 %v1349, %v1428
    %v1446 = vmul.f32 %v1350, %v1438
    %v1447 = vperm.slane %v253, 1
    %v1448 = vmul.f32 %v1439, %v1447
    %v1449 = vmul.f32 %v1440, %v1447
    %v1450 = vmul.f32 %v1441, %v1447
    %v1451 = vmul.f32 %v1442, %v1447
    %v1452 = vmul.f32 %v1443, %v1447
    %v1453 = vmul.f32 %v1444, %v1447
    %v1454 = vmul.f32 %v1445, %v1447
    %v1455 = vmul.f32 %v1446, %v1447
    %v1456 = vperm.slane %v253, 2
    %v1457 = vadd.f32 %v1448, %v1456
    %v1458 = vadd.f32 %v1449, %v1456
    %v1459 = vadd.f32 %v1450, %v1456
    %v1460 = vadd.f32 %v1451, %v1456
    %v1461 = vadd.f32 %v1452, %v1456
    %v1462 = vadd.f32 %v1453, %v1456
    %v1463 = vadd.f32 %v1454, %v1456
    %v1464 = vadd.f32 %v1455, %v1456
    %v1465 = vmul.f32 %v1457, %v1457
    %v1466 = vmul.f32 %v1458, %v1458
    %v1467 = vmul.f32 %v1459, %v1459
    %v1468 = vmul.f32 %v1460, %v1460
    %v1469 = vmul.f32 %v1461, %v1461
    %v1470 = vmul.f32 %v1462, %v1462
    %v1471 = vmul.f32 %v1463, %v1463
    %v1472 = vmul.f32 %v1464, %v1464
    %v1473 = vmul.f32 %v1465, %v1457
    %v1474 = vmul.f32 %v1466, %v1458
    %v1475 = vmul.f32 %v1467, %v1459
    %v1476 = vmul.f32 %v1468, %v1460
    %v1477 = vmul.f32 %v1469, %v1461
    %v1478 = vmul.f32 %v1470, %v1462
    %v1479 = vmul.f32 %v1471, %v1463
    %v1480 = vmul.f32 %v1472, %v1464
    %v1481 = vsel %vm660, %v1457, 0.0
    %v1482 = vsel %vm660, %v1458, 0.0
    %v1483 = vsel %vm660, %v1459, 0.0
    %v1484 = vsel %vm660, %v1460, 0.0
    %v1485 = vsel %vm660, %v1461, 0.0
    %v1486 = vsel %vm660, %v1462, 0.0
    %v1487 = vsel %vm660, %v1463, 0.0
    %v1488 = vsel %vm660, %v1464, 0.0
    %v1489 = vsel %vm660, %v1465, 0.0
    %v1490 = vsel %vm660, %v1466, 0.0
    %v1491 = vsel %vm660, %v1467, 0.0
    %v1492 = vsel %vm660, %v1468, 0.0
    %v1493 = vsel %vm660, %v1469, 0.0
    %v1494 = vsel %vm660, %v1470, 0.0
    %v1495 = vsel %vm660, %v1471, 0.0
    %v1496 = vsel %vm660, %v1472, 0.0
    %v1497 = vsel %vm660, %v1473, 0.0
    %v1498 = vsel %vm660, %v1474, 0.0
    %v1499 = vsel %vm660, %v1475, 0.0
    %v1500 = vsel %vm660, %v1476, 0.0
    %v1501 = vsel %vm660, %v1477, 0.0
    %v1502 = vsel %vm660, %v1478, 0.0
    %v1503 = vsel %vm660, %v1479, 0.0
    %v1504 = vsel %vm660, %v1480, 0.0
    %1505 = vmatpush.msra.mxu0 %v187
    %1506 = vmatpush.msra.mxu0 %v185
    %1507 = vmatpush.msra.mxu0 %v183
    %1508 = vmatpush.msra.mxu0 %v181
    %1509 = vmatpush.msra.mxu0 %v179
    %1510 = vmatpush.msra.mxu0 %v177
    %1511 = vmatpush.msra.mxu0 %v175
    %1512 = vmatpush.msra.mxu0 %v173
    %1513 = vmatpush.msra.mxu0 %v171
    %1514 = vmatpush.msra.mxu0 %v169
    %1515 = vmatpush.msra.mxu0 %v167
    %1516 = vmatpush.msra.mxu0 %v165
    %1517 = vmatpush.msra.mxu0 %v163
    %1518 = vmatpush.msra.mxu0 %v161
    %1519 = vmatpush.msra.mxu0 %v159
    %1520 = vmatpush.msra.mxu0 %v157
    %1521 = vmatmul.f32.gmra.mxu0 %v1481
    %v1522 = vpop.f32.mrf.mxu0
    %v1523 = vadd.f32 0.0, %v1522
    %1524 = vmatmul.f32.gmra.mxu0 %v1482
    %v1525 = vpop.f32.mrf.mxu0
    %v1526 = vadd.f32 0.0, %v1525
    %1527 = vmatmul.f32.gmra.mxu0 %v1483
    %v1528 = vpop.f32.mrf.mxu0
    %v1529 = vadd.f32 0.0, %v1528
    %1530 = vmatmul.f32.gmra.mxu0 %v1484
    %v1531 = vpop.f32.mrf.mxu0
    %v1532 = vadd.f32 0.0, %v1531
    %1533 = vmatmul.f32.gmra.mxu0 %v1485
    %v1534 = vpop.f32.mrf.mxu0
    %v1535 = vadd.f32 0.0, %v1534
    %1536 = vmatmul.f32.gmra.mxu0 %v1486
    %v1537 = vpop.f32.mrf.mxu0
    %v1538 = vadd.f32 0.0, %v1537
    %1539 = vmatmul.f32.gmra.mxu0 %v1487
    %v1540 = vpop.f32.mrf.mxu0
    %v1541 = vadd.f32 0.0, %v1540
    %1542 = vmatmul.f32.gmra.mxu0 %v1488
    %v1543 = vpop.f32.mrf.mxu0
    %v1544 = vadd.f32 0.0, %v1543
    %1545 = vdwg.mxu0
    %1546 = vmatpush.msra.mxu0 %v219
    %1547 = vmatpush.msra.mxu0 %v217
    %1548 = vmatpush.msra.mxu0 %v215
    %1549 = vmatpush.msra.mxu0 %v213
    %1550 = vmatpush.msra.mxu0 %v211
    %1551 = vmatpush.msra.mxu0 %v209
    %1552 = vmatpush.msra.mxu0 %v207
    %1553 = vmatpush.msra.mxu0 %v205
    %1554 = vmatpush.msra.mxu0 %v203
    %1555 = vmatpush.msra.mxu0 %v201
    %1556 = vmatpush.msra.mxu0 %v199
    %1557 = vmatpush.msra.mxu0 %v197
    %1558 = vmatpush.msra.mxu0 %v195
    %1559 = vmatpush.msra.mxu0 %v193
    %1560 = vmatpush.msra.mxu0 %v191
    %1561 = vmatpush.msra.mxu0 %v189
    %1562 = vmatmul.f32.gmra.mxu0 %v1489
    %v1563 = vpop.f32.mrf.mxu0
    %v1564 = vadd.f32 %v1523, %v1563
    %1565 = vmatmul.f32.gmra.mxu0 %v1490
    %v1566 = vpop.f32.mrf.mxu0
    %v1567 = vadd.f32 %v1526, %v1566
    %1568 = vmatmul.f32.gmra.mxu0 %v1491
    %v1569 = vpop.f32.mrf.mxu0
    %v1570 = vadd.f32 %v1529, %v1569
    %1571 = vmatmul.f32.gmra.mxu0 %v1492
    %v1572 = vpop.f32.mrf.mxu0
    %v1573 = vadd.f32 %v1532, %v1572
    %1574 = vmatmul.f32.gmra.mxu0 %v1493
    %v1575 = vpop.f32.mrf.mxu0
    %v1576 = vadd.f32 %v1535, %v1575
    %1577 = vmatmul.f32.gmra.mxu0 %v1494
    %v1578 = vpop.f32.mrf.mxu0
    %v1579 = vadd.f32 %v1538, %v1578
    %1580 = vmatmul.f32.gmra.mxu0 %v1495
    %v1581 = vpop.f32.mrf.mxu0
    %v1582 = vadd.f32 %v1541, %v1581
    %1583 = vmatmul.f32.gmra.mxu0 %v1496
    %v1584 = vpop.f32.mrf.mxu0
    %v1585 = vadd.f32 %v1544, %v1584
    %1586 = vdwg.mxu0
    %1587 = vmatpush.msra.mxu0 %v251
    %1588 = vmatpush.msra.mxu0 %v249
    %1589 = vmatpush.msra.mxu0 %v247
    %1590 = vmatpush.msra.mxu0 %v245
    %1591 = vmatpush.msra.mxu0 %v243
    %1592 = vmatpush.msra.mxu0 %v241
    %1593 = vmatpush.msra.mxu0 %v239
    %1594 = vmatpush.msra.mxu0 %v237
    %1595 = vmatpush.msra.mxu0 %v235
    %1596 = vmatpush.msra.mxu0 %v233
    %1597 = vmatpush.msra.mxu0 %v231
    %1598 = vmatpush.msra.mxu0 %v229
    %1599 = vmatpush.msra.mxu0 %v227
    %1600 = vmatpush.msra.mxu0 %v225
    %1601 = vmatpush.msra.mxu0 %v223
    %1602 = vmatpush.msra.mxu0 %v221
    %1603 = vmatmul.f32.gmra.mxu0 %v1497
    %v1604 = vpop.f32.mrf.mxu0
    %v1605 = vadd.f32 %v1564, %v1604
    %1606 = vmatmul.f32.gmra.mxu0 %v1498
    %v1607 = vpop.f32.mrf.mxu0
    %v1608 = vadd.f32 %v1567, %v1607
    %1609 = vmatmul.f32.gmra.mxu0 %v1499
    %v1610 = vpop.f32.mrf.mxu0
    %v1611 = vadd.f32 %v1570, %v1610
    %1612 = vmatmul.f32.gmra.mxu0 %v1500
    %v1613 = vpop.f32.mrf.mxu0
    %v1614 = vadd.f32 %v1573, %v1613
    %1615 = vmatmul.f32.gmra.mxu0 %v1501
    %v1616 = vpop.f32.mrf.mxu0
    %v1617 = vadd.f32 %v1576, %v1616
    %1618 = vmatmul.f32.gmra.mxu0 %v1502
    %v1619 = vpop.f32.mrf.mxu0
    %v1620 = vadd.f32 %v1579, %v1619
    %1621 = vmatmul.f32.gmra.mxu0 %v1503
    %v1622 = vpop.f32.mrf.mxu0
    %v1623 = vadd.f32 %v1582, %v1622
    %1624 = vmatmul.f32.gmra.mxu0 %v1504
    %v1625 = vpop.f32.mrf.mxu0
    %v1626 = vadd.f32 %v1585, %v1625
    %1627 = vdwg.mxu0
    %1628 = vmatpush.msra.mxu0 %v188
    %1629 = vmatpush.msra.mxu0 %v186
    %1630 = vmatpush.msra.mxu0 %v184
    %1631 = vmatpush.msra.mxu0 %v182
    %1632 = vmatpush.msra.mxu0 %v180
    %1633 = vmatpush.msra.mxu0 %v178
    %1634 = vmatpush.msra.mxu0 %v176
    %1635 = vmatpush.msra.mxu0 %v174
    %1636 = vmatpush.msra.mxu0 %v172
    %1637 = vmatpush.msra.mxu0 %v170
    %1638 = vmatpush.msra.mxu0 %v168
    %1639 = vmatpush.msra.mxu0 %v166
    %1640 = vmatpush.msra.mxu0 %v164
    %1641 = vmatpush.msra.mxu0 %v162
    %1642 = vmatpush.msra.mxu0 %v160
    %1643 = vmatpush.msra.mxu0 %v158
    %1644 = vmatmul.f32.gmra.mxu0 %v1481
    %v1645 = vpop.f32.mrf.mxu0
    %v1646 = vadd.f32 0.0, %v1645
    %1647 = vmatmul.f32.gmra.mxu0 %v1482
    %v1648 = vpop.f32.mrf.mxu0
    %v1649 = vadd.f32 0.0, %v1648
    %1650 = vmatmul.f32.gmra.mxu0 %v1483
    %v1651 = vpop.f32.mrf.mxu0
    %v1652 = vadd.f32 0.0, %v1651
    %1653 = vmatmul.f32.gmra.mxu0 %v1484
    %v1654 = vpop.f32.mrf.mxu0
    %v1655 = vadd.f32 0.0, %v1654
    %1656 = vmatmul.f32.gmra.mxu0 %v1485
    %v1657 = vpop.f32.mrf.mxu0
    %v1658 = vadd.f32 0.0, %v1657
    %1659 = vmatmul.f32.gmra.mxu0 %v1486
    %v1660 = vpop.f32.mrf.mxu0
    %v1661 = vadd.f32 0.0, %v1660
    %1662 = vmatmul.f32.gmra.mxu0 %v1487
    %v1663 = vpop.f32.mrf.mxu0
    %v1664 = vadd.f32 0.0, %v1663
    %1665 = vmatmul.f32.gmra.mxu0 %v1488
    %v1666 = vpop.f32.mrf.mxu0
    %v1667 = vadd.f32 0.0, %v1666
    %1668 = vdwg.mxu0
    %1669 = vmatpush.msra.mxu0 %v220
    %1670 = vmatpush.msra.mxu0 %v218
    %1671 = vmatpush.msra.mxu0 %v216
    %1672 = vmatpush.msra.mxu0 %v214
    %1673 = vmatpush.msra.mxu0 %v212
    %1674 = vmatpush.msra.mxu0 %v210
    %1675 = vmatpush.msra.mxu0 %v208
    %1676 = vmatpush.msra.mxu0 %v206
    %1677 = vmatpush.msra.mxu0 %v204
    %1678 = vmatpush.msra.mxu0 %v202
    %1679 = vmatpush.msra.mxu0 %v200
    %1680 = vmatpush.msra.mxu0 %v198
    %1681 = vmatpush.msra.mxu0 %v196
    %1682 = vmatpush.msra.mxu0 %v194
    %1683 = vmatpush.msra.mxu0 %v192
    %1684 = vmatpush.msra.mxu0 %v190
    %1685 = vmatmul.f32.gmra.mxu0 %v1489
    %v1686 = vpop.f32.mrf.mxu0
    %v1687 = vadd.f32 %v1646, %v1686
    %1688 = vmatmul.f32.gmra.mxu0 %v1490
    %v1689 = vpop.f32.mrf.mxu0
    %v1690 = vadd.f32 %v1649, %v1689
    %1691 = vmatmul.f32.gmra.mxu0 %v1491
    %v1692 = vpop.f32.mrf.mxu0
    %v1693 = vadd.f32 %v1652, %v1692
    %1694 = vmatmul.f32.gmra.mxu0 %v1492
    %v1695 = vpop.f32.mrf.mxu0
    %v1696 = vadd.f32 %v1655, %v1695
    %1697 = vmatmul.f32.gmra.mxu0 %v1493
    %v1698 = vpop.f32.mrf.mxu0
    %v1699 = vadd.f32 %v1658, %v1698
    %1700 = vmatmul.f32.gmra.mxu0 %v1494
    %v1701 = vpop.f32.mrf.mxu0
    %v1702 = vadd.f32 %v1661, %v1701
    %1703 = vmatmul.f32.gmra.mxu0 %v1495
    %v1704 = vpop.f32.mrf.mxu0
    %v1705 = vadd.f32 %v1664, %v1704
    %1706 = vmatmul.f32.gmra.mxu0 %v1496
    %v1707 = vpop.f32.mrf.mxu0
    %v1708 = vadd.f32 %v1667, %v1707
    %1709 = vdwg.mxu0
    %1710 = vmatpush.msra.mxu0 %v252
    %1711 = vmatpush.msra.mxu0 %v250
    %1712 = vmatpush.msra.mxu0 %v248
    %1713 = vmatpush.msra.mxu0 %v246
    %1714 = vmatpush.msra.mxu0 %v244
    %1715 = vmatpush.msra.mxu0 %v242
    %1716 = vmatpush.msra.mxu0 %v240
    %1717 = vmatpush.msra.mxu0 %v238
    %1718 = vmatpush.msra.mxu0 %v236
    %1719 = vmatpush.msra.mxu0 %v234
    %1720 = vmatpush.msra.mxu0 %v232
    %1721 = vmatpush.msra.mxu0 %v230
    %1722 = vmatpush.msra.mxu0 %v228
    %1723 = vmatpush.msra.mxu0 %v226
    %1724 = vmatpush.msra.mxu0 %v224
    %1725 = vmatpush.msra.mxu0 %v222
    %1726 = vmatmul.f32.gmra.mxu0 %v1497
    %v1727 = vpop.f32.mrf.mxu0
    %v1728 = vadd.f32 %v1687, %v1727
    %1729 = vmatmul.f32.gmra.mxu0 %v1498
    %v1730 = vpop.f32.mrf.mxu0
    %v1731 = vadd.f32 %v1690, %v1730
    %1732 = vmatmul.f32.gmra.mxu0 %v1499
    %v1733 = vpop.f32.mrf.mxu0
    %v1734 = vadd.f32 %v1693, %v1733
    %1735 = vmatmul.f32.gmra.mxu0 %v1500
    %v1736 = vpop.f32.mrf.mxu0
    %v1737 = vadd.f32 %v1696, %v1736
    %1738 = vmatmul.f32.gmra.mxu0 %v1501
    %v1739 = vpop.f32.mrf.mxu0
    %v1740 = vadd.f32 %v1699, %v1739
    %1741 = vmatmul.f32.gmra.mxu0 %v1502
    %v1742 = vpop.f32.mrf.mxu0
    %v1743 = vadd.f32 %v1702, %v1742
    %1744 = vmatmul.f32.gmra.mxu0 %v1503
    %v1745 = vpop.f32.mrf.mxu0
    %v1746 = vadd.f32 %v1705, %v1745
    %1747 = vmatmul.f32.gmra.mxu0 %v1504
    %v1748 = vpop.f32.mrf.mxu0
    %v1749 = vadd.f32 %v1708, %v1748
    %1750 = vdwg.mxu0
    %v1751 = vperm.slane %v1728, 0
    %v1752 = vperm.slane %v1731, 0
    %v1753 = vperm.slane %v1734, 0
    %v1754 = vperm.slane %v1737, 0
    %v1755 = vperm.slane %v1740, 0
    %v1756 = vperm.slane %v1743, 0
    %v1757 = vperm.slane %v1746, 0
    %v1758 = vperm.slane %v1749, 0
    %v1759 = vmul.f32 %v770, %v1751
    %v1760 = vmul.f32 %v775, %v1752
    %v1761 = vmul.f32 %v780, %v1753
    %v1762 = vmul.f32 %v785, %v1754
    %v1763 = vmul.f32 %v790, %v1755
    %v1764 = vmul.f32 %v795, %v1756
    %v1765 = vmul.f32 %v800, %v1757
    %v1766 = vmul.f32 %v805, %v1758
    %v1767 = vperm.slane %v1728, 1
    %v1768 = vperm.slane %v1731, 1
    %v1769 = vperm.slane %v1734, 1
    %v1770 = vperm.slane %v1737, 1
    %v1771 = vperm.slane %v1740, 1
    %v1772 = vperm.slane %v1743, 1
    %v1773 = vperm.slane %v1746, 1
    %v1774 = vperm.slane %v1749, 1
    %v1775 = vmul.f32 %v825, %v1767
    %v1776 = vmul.f32 %v829, %v1768
    %v1777 = vmul.f32 %v833, %v1769
    %v1778 = vmul.f32 %v837, %v1770
    %v1779 = vmul.f32 %v841, %v1771
    %v1780 = vmul.f32 %v845, %v1772
    %v1781 = vmul.f32 %v849, %v1773
    %v1782 = vmul.f32 %v853, %v1774
    %v1783 = vadd.f32 %v1759, %v1775
    %v1784 = vadd.f32 %v1760, %v1776
    %v1785 = vadd.f32 %v1761, %v1777
    %v1786 = vadd.f32 %v1762, %v1778
    %v1787 = vadd.f32 %v1763, %v1779
    %v1788 = vadd.f32 %v1764, %v1780
    %v1789 = vadd.f32 %v1765, %v1781
    %v1790 = vadd.f32 %v1766, %v1782
    %v1791 = vperm.slane %v1728, 2
    %v1792 = vperm.slane %v1731, 2
    %v1793 = vperm.slane %v1734, 2
    %v1794 = vperm.slane %v1737, 2
    %v1795 = vperm.slane %v1740, 2
    %v1796 = vperm.slane %v1743, 2
    %v1797 = vperm.slane %v1746, 2
    %v1798 = vperm.slane %v1749, 2
    %v1799 = vmul.f32 %v881, %v1791
    %v1800 = vmul.f32 %v885, %v1792
    %v1801 = vmul.f32 %v889, %v1793
    %v1802 = vmul.f32 %v893, %v1794
    %v1803 = vmul.f32 %v897, %v1795
    %v1804 = vmul.f32 %v901, %v1796
    %v1805 = vmul.f32 %v905, %v1797
    %v1806 = vmul.f32 %v909, %v1798
    %v1807 = vadd.f32 %v1783, %v1799
    %v1808 = vadd.f32 %v1784, %v1800
    %v1809 = vadd.f32 %v1785, %v1801
    %v1810 = vadd.f32 %v1786, %v1802
    %v1811 = vadd.f32 %v1787, %v1803
    %v1812 = vadd.f32 %v1788, %v1804
    %v1813 = vadd.f32 %v1789, %v1805
    %v1814 = vadd.f32 %v1790, %v1806
    %v1815 = vperm.slane %v1728, 3
    %v1816 = vperm.slane %v1731, 3
    %v1817 = vperm.slane %v1734, 3
    %v1818 = vperm.slane %v1737, 3
    %v1819 = vperm.slane %v1740, 3
    %v1820 = vperm.slane %v1743, 3
    %v1821 = vperm.slane %v1746, 3
    %v1822 = vperm.slane %v1749, 3
    %v1823 = vmul.f32 %v937, %v1815
    %v1824 = vmul.f32 %v941, %v1816
    %v1825 = vmul.f32 %v945, %v1817
    %v1826 = vmul.f32 %v949, %v1818
    %v1827 = vmul.f32 %v953, %v1819
    %v1828 = vmul.f32 %v957, %v1820
    %v1829 = vmul.f32 %v961, %v1821
    %v1830 = vmul.f32 %v965, %v1822
    %v1831 = vadd.f32 %v1807, %v1823
    %v1832 = vadd.f32 %v1808, %v1824
    %v1833 = vadd.f32 %v1809, %v1825
    %v1834 = vadd.f32 %v1810, %v1826
    %v1835 = vadd.f32 %v1811, %v1827
    %v1836 = vadd.f32 %v1812, %v1828
    %v1837 = vadd.f32 %v1813, %v1829
    %v1838 = vadd.f32 %v1814, %v1830
    %v1839 = vperm.slane %v1728, 4
    %v1840 = vperm.slane %v1731, 4
    %v1841 = vperm.slane %v1734, 4
    %v1842 = vperm.slane %v1737, 4
    %v1843 = vperm.slane %v1740, 4
    %v1844 = vperm.slane %v1743, 4
    %v1845 = vperm.slane %v1746, 4
    %v1846 = vperm.slane %v1749, 4
    %v1847 = vmul.f32 %v993, %v1839
    %v1848 = vmul.f32 %v997, %v1840
    %v1849 = vmul.f32 %v1001, %v1841
    %v1850 = vmul.f32 %v1005, %v1842
    %v1851 = vmul.f32 %v1009, %v1843
    %v1852 = vmul.f32 %v1013, %v1844
    %v1853 = vmul.f32 %v1017, %v1845
    %v1854 = vmul.f32 %v1021, %v1846
    %v1855 = vadd.f32 %v1831, %v1847
    %v1856 = vadd.f32 %v1832, %v1848
    %v1857 = vadd.f32 %v1833, %v1849
    %v1858 = vadd.f32 %v1834, %v1850
    %v1859 = vadd.f32 %v1835, %v1851
    %v1860 = vadd.f32 %v1836, %v1852
    %v1861 = vadd.f32 %v1837, %v1853
    %v1862 = vadd.f32 %v1838, %v1854
    %v1863 = vperm.slane %v1728, 5
    %v1864 = vperm.slane %v1731, 5
    %v1865 = vperm.slane %v1734, 5
    %v1866 = vperm.slane %v1737, 5
    %v1867 = vperm.slane %v1740, 5
    %v1868 = vperm.slane %v1743, 5
    %v1869 = vperm.slane %v1746, 5
    %v1870 = vperm.slane %v1749, 5
    %v1871 = vmul.f32 %v1049, %v1863
    %v1872 = vmul.f32 %v1053, %v1864
    %v1873 = vmul.f32 %v1057, %v1865
    %v1874 = vmul.f32 %v1061, %v1866
    %v1875 = vmul.f32 %v1065, %v1867
    %v1876 = vmul.f32 %v1069, %v1868
    %v1877 = vmul.f32 %v1073, %v1869
    %v1878 = vmul.f32 %v1077, %v1870
    %v1879 = vadd.f32 %v1855, %v1871
    %v1880 = vadd.f32 %v1856, %v1872
    %v1881 = vadd.f32 %v1857, %v1873
    %v1882 = vadd.f32 %v1858, %v1874
    %v1883 = vadd.f32 %v1859, %v1875
    %v1884 = vadd.f32 %v1860, %v1876
    %v1885 = vadd.f32 %v1861, %v1877
    %v1886 = vadd.f32 %v1862, %v1878
    %v1887 = vperm.slane %v1728, 6
    %v1888 = vperm.slane %v1731, 6
    %v1889 = vperm.slane %v1734, 6
    %v1890 = vperm.slane %v1737, 6
    %v1891 = vperm.slane %v1740, 6
    %v1892 = vperm.slane %v1743, 6
    %v1893 = vperm.slane %v1746, 6
    %v1894 = vperm.slane %v1749, 6
    %v1895 = vmul.f32 %v1105, %v1887
    %v1896 = vmul.f32 %v1109, %v1888
    %v1897 = vmul.f32 %v1113, %v1889
    %v1898 = vmul.f32 %v1117, %v1890
    %v1899 = vmul.f32 %v1121, %v1891
    %v1900 = vmul.f32 %v1125, %v1892
    %v1901 = vmul.f32 %v1129, %v1893
    %v1902 = vmul.f32 %v1133, %v1894
    %v1903 = vadd.f32 %v1879, %v1895
    %v1904 = vadd.f32 %v1880, %v1896
    %v1905 = vadd.f32 %v1881, %v1897
    %v1906 = vadd.f32 %v1882, %v1898
    %v1907 = vadd.f32 %v1883, %v1899
    %v1908 = vadd.f32 %v1884, %v1900
    %v1909 = vadd.f32 %v1885, %v1901
    %v1910 = vadd.f32 %v1886, %v1902
    %v1911 = vperm.slane %v1728, 7
    %v1912 = vperm.slane %v1731, 7
    %v1913 = vperm.slane %v1734, 7
    %v1914 = vperm.slane %v1737, 7
    %v1915 = vperm.slane %v1740, 7
    %v1916 = vperm.slane %v1743, 7
    %v1917 = vperm.slane %v1746, 7
    %v1918 = vperm.slane %v1749, 7
    %v1919 = vmul.f32 %v1161, %v1911
    %v1920 = vmul.f32 %v1165, %v1912
    %v1921 = vmul.f32 %v1169, %v1913
    %v1922 = vmul.f32 %v1173, %v1914
    %v1923 = vmul.f32 %v1177, %v1915
    %v1924 = vmul.f32 %v1181, %v1916
    %v1925 = vmul.f32 %v1185, %v1917
    %v1926 = vmul.f32 %v1189, %v1918
    %v1927 = vadd.f32 %v1903, %v1919
    %v1928 = vadd.f32 %v1904, %v1920
    %v1929 = vadd.f32 %v1905, %v1921
    %v1930 = vadd.f32 %v1906, %v1922
    %v1931 = vadd.f32 %v1907, %v1923
    %v1932 = vadd.f32 %v1908, %v1924
    %v1933 = vadd.f32 %v1909, %v1925
    %v1934 = vadd.f32 %v1910, %v1926
    %v1935 = vadd.f32 %v1605, %v1927
    %v1936 = vadd.f32 %v1608, %v1928
    %v1937 = vadd.f32 %v1611, %v1929
    %v1938 = vadd.f32 %v1614, %v1930
    %v1939 = vadd.f32 %v1617, %v1931
    %v1940 = vadd.f32 %v1620, %v1932
    %v1941 = vadd.f32 %v1623, %v1933
    %v1942 = vadd.f32 %v1626, %v1934
    %v1943 = vperm.slane %v253, 3
    %v1944 = vadd.f32 %v1935, %v1943
    %v1945 = vadd.f32 %v1936, %v1943
    %v1946 = vadd.f32 %v1937, %v1943
    %v1947 = vadd.f32 %v1938, %v1943
    %v1948 = vadd.f32 %v1939, %v1943
    %v1949 = vadd.f32 %v1940, %v1943
    %v1950 = vadd.f32 %v1941, %v1943
    %v1951 = vadd.f32 %v1942, %v1943
    %v1952 = vmax.f32 %v1944, 0.0
    %v1953 = vmax.f32 %v1945, 0.0
    %v1954 = vmax.f32 %v1946, 0.0
    %v1955 = vmax.f32 %v1947, 0.0
    %v1956 = vmax.f32 %v1948, 0.0
    %v1957 = vmax.f32 %v1949, 0.0
    %v1958 = vmax.f32 %v1950, 0.0
    %v1959 = vmax.f32 %v1951, 0.0
    %v1960 = vsel %vm660, %v1952, 0.0
    %1961 = vadd.xlane.f32.xlu0 %v1960
    %v1962 = vpop.xlane.xlu0 %1961
    %v1963 = vsel %vm660, %v1953, 0.0
    %1964 = vadd.xlane.f32.xlu0 %v1963
    %v1965 = vpop.xlane.xlu0 %1964
    %v1966 = vsel %vm660, %v1954, 0.0
    %1967 = vadd.xlane.f32.xlu0 %v1966
    %v1968 = vpop.xlane.xlu0 %1967
    %v1969 = vsel %vm660, %v1955, 0.0
    %1970 = vadd.xlane.f32.xlu0 %v1969
    %v1971 = vpop.xlane.xlu0 %1970
    %v1972 = vsel %vm660, %v1956, 0.0
    %1973 = vadd.xlane.f32.xlu0 %v1972
    %v1974 = vpop.xlane.xlu0 %1973
    %v1975 = vsel %vm660, %v1957, 0.0
    %1976 = vadd.xlane.f32.xlu0 %v1975
    %v1977 = vpop.xlane.xlu0 %1976
    %v1978 = vsel %vm660, %v1958, 0.0
    %1979 = vadd.xlane.f32.xlu0 %v1978
    %v1980 = vpop.xlane.xlu0 %1979
    %v1981 = vsel %vm660, %v1959, 0.0
    %1982 = vadd.xlane.f32.xlu0 %v1981
    %v1983 = vpop.xlane.xlu0 %1982
    %v1984 = vmul.f32 %v1962, %v1270
    %v1985 = vmul.f32 %v1965, %v1270
    %v1986 = vmul.f32 %v1968, %v1270
    %v1987 = vmul.f32 %v1971, %v1270
    %v1988 = vmul.f32 %v1974, %v1270
    %v1989 = vmul.f32 %v1977, %v1270
    %v1990 = vmul.f32 %v1980, %v1270
    %v1991 = vmul.f32 %v1983, %v1270
    %v1992 = vmul.f32 %v1952, %v1952
    %v1993 = vmul.f32 %v1953, %v1953
    %v1994 = vmul.f32 %v1954, %v1954
    %v1995 = vmul.f32 %v1955, %v1955
    %v1996 = vmul.f32 %v1956, %v1956
    %v1997 = vmul.f32 %v1957, %v1957
    %v1998 = vmul.f32 %v1958, %v1958
    %v1999 = vmul.f32 %v1959, %v1959
    %v2000 = vsel %vm660, %v1992, 0.0
    %2001 = vadd.xlane.f32.xlu0 %v2000
    %v2002 = vpop.xlane.xlu0 %2001
    %v2003 = vsel %vm660, %v1993, 0.0
    %2004 = vadd.xlane.f32.xlu0 %v2003
    %v2005 = vpop.xlane.xlu0 %2004
    %v2006 = vsel %vm660, %v1994, 0.0
    %2007 = vadd.xlane.f32.xlu0 %v2006
    %v2008 = vpop.xlane.xlu0 %2007
    %v2009 = vsel %vm660, %v1995, 0.0
    %2010 = vadd.xlane.f32.xlu0 %v2009
    %v2011 = vpop.xlane.xlu0 %2010
    %v2012 = vsel %vm660, %v1996, 0.0
    %2013 = vadd.xlane.f32.xlu0 %v2012
    %v2014 = vpop.xlane.xlu0 %2013
    %v2015 = vsel %vm660, %v1997, 0.0
    %2016 = vadd.xlane.f32.xlu0 %v2015
    %v2017 = vpop.xlane.xlu0 %2016
    %v2018 = vsel %vm660, %v1998, 0.0
    %2019 = vadd.xlane.f32.xlu0 %v2018
    %v2020 = vpop.xlane.xlu0 %2019
    %v2021 = vsel %vm660, %v1999, 0.0
    %2022 = vadd.xlane.f32.xlu0 %v2021
    %v2023 = vpop.xlane.xlu0 %2022
    %v2024 = vmul.f32 %v2002, %v1270
    %v2025 = vmul.f32 %v2005, %v1270
    %v2026 = vmul.f32 %v2008, %v1270
    %v2027 = vmul.f32 %v2011, %v1270
    %v2028 = vmul.f32 %v2014, %v1270
    %v2029 = vmul.f32 %v2017, %v1270
    %v2030 = vmul.f32 %v2020, %v1270
    %v2031 = vmul.f32 %v2023, %v1270
    %v2032 = vmul.f32 %v1984, %v1984
    %v2033 = vmul.f32 %v1985, %v1985
    %v2034 = vmul.f32 %v1986, %v1986
    %v2035 = vmul.f32 %v1987, %v1987
    %v2036 = vmul.f32 %v1988, %v1988
    %v2037 = vmul.f32 %v1989, %v1989
    %v2038 = vmul.f32 %v1990, %v1990
    %v2039 = vmul.f32 %v1991, %v1991
    %v2040 = vsub.f32 %v2024, %v2032
    %v2041 = vsub.f32 %v2025, %v2033
    %v2042 = vsub.f32 %v2026, %v2034
    %v2043 = vsub.f32 %v2027, %v2035
    %v2044 = vsub.f32 %v2028, %v2036
    %v2045 = vsub.f32 %v2029, %v2037
    %v2046 = vsub.f32 %v2030, %v2038
    %v2047 = vsub.f32 %v2031, %v2039
    %v2048 = vmax.f32 %v2040, 0.0
    %v2049 = vmax.f32 %v2041, 0.0
    %v2050 = vmax.f32 %v2042, 0.0
    %v2051 = vmax.f32 %v2043, 0.0
    %v2052 = vmax.f32 %v2044, 0.0
    %v2053 = vmax.f32 %v2045, 0.0
    %v2054 = vmax.f32 %v2046, 0.0
    %v2055 = vmax.f32 %v2047, 0.0
    %v2056 = vsub.f32 %v1952, %v1984
    %v2057 = vsub.f32 %v1953, %v1985
    %v2058 = vsub.f32 %v1954, %v1986
    %v2059 = vsub.f32 %v1955, %v1987
    %v2060 = vsub.f32 %v1956, %v1988
    %v2061 = vsub.f32 %v1957, %v1989
    %v2062 = vsub.f32 %v1958, %v1990
    %v2063 = vsub.f32 %v1959, %v1991
    %v2064 = vadd.f32 %v2048, 1e-05
    %v2065 = vadd.f32 %v2049, 1e-05
    %v2066 = vadd.f32 %v2050, 1e-05
    %v2067 = vadd.f32 %v2051, 1e-05
    %v2068 = vadd.f32 %v2052, 1e-05
    %v2069 = vadd.f32 %v2053, 1e-05
    %v2070 = vadd.f32 %v2054, 1e-05
    %v2071 = vadd.f32 %v2055, 1e-05
    %v2072 = vrsqrt.pop %v2064
    %v2073 = vmul.f32 %v2072, %v2064
    %v2074 = vmul.f32 %v2073, %v2072
    %v2075 = vmul.f32 0.5, %v2074
    %v2076 = vsub.f32 1.5, %v2075
    %v2077 = vmul.f32 %v2072, %v2076
    %vm2078 = vweird.f32 %v2064
    %vm2079 = vweird.f32 %v2072
    %vm2080 = vmor %vm2078, %vm2079
    %v2081 = vsel %vm2080, %v2072, %v2077
    %v2082 = vrsqrt.pop %v2065
    %v2083 = vmul.f32 %v2082, %v2065
    %v2084 = vmul.f32 %v2083, %v2082
    %v2085 = vmul.f32 0.5, %v2084
    %v2086 = vsub.f32 1.5, %v2085
    %v2087 = vmul.f32 %v2082, %v2086
    %vm2088 = vweird.f32 %v2065
    %vm2089 = vweird.f32 %v2082
    %vm2090 = vmor %vm2088, %vm2089
    %v2091 = vsel %vm2090, %v2082, %v2087
    %v2092 = vrsqrt.pop %v2066
    %v2093 = vmul.f32 %v2092, %v2066
    %v2094 = vmul.f32 %v2093, %v2092
    %v2095 = vmul.f32 0.5, %v2094
    %v2096 = vsub.f32 1.5, %v2095
    %v2097 = vmul.f32 %v2092, %v2096
    %vm2098 = vweird.f32 %v2066
    %vm2099 = vweird.f32 %v2092
    %vm2100 = vmor %vm2098, %vm2099
    %v2101 = vsel %vm2100, %v2092, %v2097
    %v2102 = vrsqrt.pop %v2067
    %v2103 = vmul.f32 %v2102, %v2067
    %v2104 = vmul.f32 %v2103, %v2102
    %v2105 = vmul.f32 0.5, %v2104
    %v2106 = vsub.f32 1.5, %v2105
    %v2107 = vmul.f32 %v2102, %v2106
    %vm2108 = vweird.f32 %v2067
    %vm2109 = vweird.f32 %v2102
    %vm2110 = vmor %vm2108, %vm2109
    %v2111 = vsel %vm2110, %v2102, %v2107
    %v2112 = vrsqrt.pop %v2068
    %v2113 = vmul.f32 %v2112, %v2068
    %v2114 = vmul.f32 %v2113, %v2112
    %v2115 = vmul.f32 0.5, %v2114
    %v2116 = vsub.f32 1.5, %v2115
    %v2117 = vmul.f32 %v2112, %v2116
    %vm2118 = vweird.f32 %v2068
    %vm2119 = vweird.f32 %v2112
    %vm2120 = vmor %vm2118, %vm2119
    %v2121 = vsel %vm2120, %v2112, %v2117
    %v2122 = vrsqrt.pop %v2069
    %v2123 = vmul.f32 %v2122, %v2069
    %v2124 = vmul.f32 %v2123, %v2122
    %v2125 = vmul.f32 0.5, %v2124
    %v2126 = vsub.f32 1.5, %v2125
    %v2127 = vmul.f32 %v2122, %v2126
    %vm2128 = vweird.f32 %v2069
    %vm2129 = vweird.f32 %v2122
    %vm2130 = vmor %vm2128, %vm2129
    %v2131 = vsel %vm2130, %v2122, %v2127
    %v2132 = vrsqrt.pop %v2070
    %v2133 = vmul.f32 %v2132, %v2070
    %v2134 = vmul.f32 %v2133, %v2132
    %v2135 = vmul.f32 0.5, %v2134
    %v2136 = vsub.f32 1.5, %v2135
    %v2137 = vmul.f32 %v2132, %v2136
    %vm2138 = vweird.f32 %v2070
    %vm2139 = vweird.f32 %v2132
    %vm2140 = vmor %vm2138, %vm2139
    %v2141 = vsel %vm2140, %v2132, %v2137
    %v2142 = vrsqrt.pop %v2071
    %v2143 = vmul.f32 %v2142, %v2071
    %v2144 = vmul.f32 %v2143, %v2142
    %v2145 = vmul.f32 0.5, %v2144
    %v2146 = vsub.f32 1.5, %v2145
    %v2147 = vmul.f32 %v2142, %v2146
    %vm2148 = vweird.f32 %v2071
    %vm2149 = vweird.f32 %v2142
    %vm2150 = vmor %vm2148, %vm2149
    %v2151 = vsel %vm2150, %v2142, %v2147
    %v2152 = vmul.f32 %v2056, %v2081
    %v2153 = vmul.f32 %v2057, %v2091
    %v2154 = vmul.f32 %v2058, %v2101
    %v2155 = vmul.f32 %v2059, %v2111
    %v2156 = vmul.f32 %v2060, %v2121
    %v2157 = vmul.f32 %v2061, %v2131
    %v2158 = vmul.f32 %v2062, %v2141
    %v2159 = vmul.f32 %v2063, %v2151
    %v2160 = vperm.slane %v253, 4
    %v2161 = vmul.f32 %v2152, %v2160
    %v2162 = vmul.f32 %v2153, %v2160
    %v2163 = vmul.f32 %v2154, %v2160
    %v2164 = vmul.f32 %v2155, %v2160
    %v2165 = vmul.f32 %v2156, %v2160
    %v2166 = vmul.f32 %v2157, %v2160
    %v2167 = vmul.f32 %v2158, %v2160
    %v2168 = vmul.f32 %v2159, %v2160
    %v2169 = vperm.slane %v253, 5
    %v2170 = vadd.f32 %v2161, %v2169
    %v2171 = vadd.f32 %v2162, %v2169
    %v2172 = vadd.f32 %v2163, %v2169
    %v2173 = vadd.f32 %v2164, %v2169
    %v2174 = vadd.f32 %v2165, %v2169
    %v2175 = vadd.f32 %v2166, %v2169
    %v2176 = vadd.f32 %v2167, %v2169
    %v2177 = vadd.f32 %v2168, %v2169
    %v2178 = vadd.f32 %v1457, %v2170
    %v2179 = vadd.f32 %v1458, %v2171
    %v2180 = vadd.f32 %v1459, %v2172
    %v2181 = vadd.f32 %v1460, %v2173
    %v2182 = vadd.f32 %v1461, %v2174
    %v2183 = vadd.f32 %v1462, %v2175
    %v2184 = vadd.f32 %v1463, %v2176
    %v2185 = vadd.f32 %v1464, %v2177
    %v2186 = vlaneseq
    %v2187 = vshrl.u32 %v2186, 7
    %v2188 = vld [vmem:[%s2] sm:$0xff]
    %v2189 = vrot.slane %v2188, 1
    %v2190 = vrot.slane %v2188, 2
    %v2191 = vrot.slane %v2188, 3
    %v2192 = vrot.slane %v2188, 4
    %v2193 = vrot.slane %v2188, 5
    %v2194 = vrot.slane %v2188, 6
    %v2195 = vrot.slane %v2188, 7
    %v2196 = vperm.slane %v2188, 0
    %v2197 = vperm.slane %v2189, 0
    %v2198 = vperm.slane %v2190, 0
    %v2199 = vperm.slane %v2191, 0
    %v2200 = vperm.slane %v2192, 0
    %v2201 = vperm.slane %v2193, 0
    %v2202 = vperm.slane %v2194, 0
    %v2203 = vperm.slane %v2195, 0
    %vm2204 = vcmp.eq.s32.totalorder %v2187, %v2196
    %vm2205 = vcmp.eq.s32.totalorder %v2187, %v2197
    %vm2206 = vcmp.eq.s32.totalorder %v2187, %v2198
    %vm2207 = vcmp.eq.s32.totalorder %v2187, %v2199
    %vm2208 = vcmp.eq.s32.totalorder %v2187, %v2200
    %vm2209 = vcmp.eq.s32.totalorder %v2187, %v2201
    %vm2210 = vcmp.eq.s32.totalorder %v2187, %v2202
    %vm2211 = vcmp.eq.s32.totalorder %v2187, %v2203
    %v2212 = vsel %vm2204, 1, 0
    %v2213 = vsel %vm2205, 1, 0
    %v2214 = vsel %vm2206, 1, 0
    %v2215 = vsel %vm2207, 1, 0
    %v2216 = vsel %vm2208, 1, 0
    %v2217 = vsel %vm2209, 1, 0
    %v2218 = vsel %vm2210, 1, 0
    %v2219 = vsel %vm2211, 1, 0
    %v2220 = vcvt.s32.f32 %v2212
    %v2221 = vcvt.s32.f32 %v2213
    %v2222 = vcvt.s32.f32 %v2214
    %v2223 = vcvt.s32.f32 %v2215
    %v2224 = vcvt.s32.f32 %v2216
    %v2225 = vcvt.s32.f32 %v2217
    %v2226 = vcvt.s32.f32 %v2218
    %v2227 = vcvt.s32.f32 %v2219
    %2229 = vset.pattern.permute.xlu0 0
    %2230 = vperm.xlu0 %2229, %v2220
    %v2231 = vpop.permute.xlu0 %2230
    %2234 = vset.pattern.permute.xlu0 0
    %2235 = vperm.xlu0 %2234, %v2221
    %v2236 = vpop.permute.xlu0 %2235
    %2239 = vset.pattern.permute.xlu0 0
    %2240 = vperm.xlu0 %2239, %v2222
    %v2241 = vpop.permute.xlu0 %2240
    %2244 = vset.pattern.permute.xlu0 0
    %2245 = vperm.xlu0 %2244, %v2223
    %v2246 = vpop.permute.xlu0 %2245
    %2249 = vset.pattern.permute.xlu0 0
    %2250 = vperm.xlu0 %2249, %v2224
    %v2251 = vpop.permute.xlu0 %2250
    %2254 = vset.pattern.permute.xlu0 0
    %2255 = vperm.xlu0 %2254, %v2225
    %v2256 = vpop.permute.xlu0 %2255
    %2259 = vset.pattern.permute.xlu0 0
    %2260 = vperm.xlu0 %2259, %v2226
    %v2261 = vpop.permute.xlu0 %2260
    %2264 = vset.pattern.permute.xlu0 0
    %2265 = vperm.xlu0 %2264, %v2227
    %v2266 = vpop.permute.xlu0 %2265
    %v2268 = vmul.f32 %v2178, %v2231
    %v2269 = vmul.f32 %v2179, %v2236
    %v2270 = vmul.f32 %v2180, %v2241
    %v2271 = vmul.f32 %v2181, %v2246
    %v2272 = vmul.f32 %v2182, %v2251
    %v2273 = vmul.f32 %v2183, %v2256
    %v2274 = vmul.f32 %v2184, %v2261
    %v2275 = vmul.f32 %v2185, %v2266
    %v2276 = vsel %vm660, %v2268, 0.0
    %v2277 = vrot.slane %v2276, 4
    %v2278 = vadd.f32 %v2276, %v2277
    %v2279 = vrot.slane %v2278, 2
    %v2280 = vadd.f32 %v2278, %v2279
    %v2281 = vrot.slane %v2280, 1
    %v2282 = vadd.f32 %v2280, %v2281
    %v2283 = vsel %vm660, %v2269, 0.0
    %v2284 = vrot.slane %v2283, 4
    %v2285 = vadd.f32 %v2283, %v2284
    %v2286 = vrot.slane %v2285, 2
    %v2287 = vadd.f32 %v2285, %v2286
    %v2288 = vrot.slane %v2287, 1
    %v2289 = vadd.f32 %v2287, %v2288
    %v2290 = vsel %vm660, %v2270, 0.0
    %v2291 = vrot.slane %v2290, 4
    %v2292 = vadd.f32 %v2290, %v2291
    %v2293 = vrot.slane %v2292, 2
    %v2294 = vadd.f32 %v2292, %v2293
    %v2295 = vrot.slane %v2294, 1
    %v2296 = vadd.f32 %v2294, %v2295
    %v2297 = vsel %vm660, %v2271, 0.0
    %v2298 = vrot.slane %v2297, 4
    %v2299 = vadd.f32 %v2297, %v2298
    %v2300 = vrot.slane %v2299, 2
    %v2301 = vadd.f32 %v2299, %v2300
    %v2302 = vrot.slane %v2301, 1
    %v2303 = vadd.f32 %v2301, %v2302
    %v2304 = vsel %vm660, %v2272, 0.0
    %v2305 = vrot.slane %v2304, 4
    %v2306 = vadd.f32 %v2304, %v2305
    %v2307 = vrot.slane %v2306, 2
    %v2308 = vadd.f32 %v2306, %v2307
    %v2309 = vrot.slane %v2308, 1
    %v2310 = vadd.f32 %v2308, %v2309
    %v2311 = vsel %vm660, %v2273, 0.0
    %v2312 = vrot.slane %v2311, 4
    %v2313 = vadd.f32 %v2311, %v2312
    %v2314 = vrot.slane %v2313, 2
    %v2315 = vadd.f32 %v2313, %v2314
    %v2316 = vrot.slane %v2315, 1
    %v2317 = vadd.f32 %v2315, %v2316
    %v2318 = vsel %vm660, %v2274, 0.0
    %v2319 = vrot.slane %v2318, 4
    %v2320 = vadd.f32 %v2318, %v2319
    %v2321 = vrot.slane %v2320, 2
    %v2322 = vadd.f32 %v2320, %v2321
    %v2323 = vrot.slane %v2322, 1
    %v2324 = vadd.f32 %v2322, %v2323
    %v2325 = vsel %vm660, %v2275, 0.0
    %v2326 = vrot.slane %v2325, 4
    %v2327 = vadd.f32 %v2325, %v2326
    %v2328 = vrot.slane %v2327, 2
    %v2329 = vadd.f32 %v2327, %v2328
    %v2330 = vrot.slane %v2329, 1
    %v2331 = vadd.f32 %v2329, %v2330
    %v2332 = vsel %vm660, %v2178, 0.0
    %v2333 = vrot.slane %v2332, 4
    %v2334 = vadd.f32 %v2332, %v2333
    %v2335 = vrot.slane %v2334, 2
    %v2336 = vadd.f32 %v2334, %v2335
    %v2337 = vrot.slane %v2336, 1
    %v2338 = vadd.f32 %v2336, %v2337
    %v2339 = vsel %vm660, %v2179, 0.0
    %v2340 = vrot.slane %v2339, 4
    %v2341 = vadd.f32 %v2339, %v2340
    %v2342 = vrot.slane %v2341, 2
    %v2343 = vadd.f32 %v2341, %v2342
    %v2344 = vrot.slane %v2343, 1
    %v2345 = vadd.f32 %v2343, %v2344
    %v2346 = vsel %vm660, %v2180, 0.0
    %v2347 = vrot.slane %v2346, 4
    %v2348 = vadd.f32 %v2346, %v2347
    %v2349 = vrot.slane %v2348, 2
    %v2350 = vadd.f32 %v2348, %v2349
    %v2351 = vrot.slane %v2350, 1
    %v2352 = vadd.f32 %v2350, %v2351
    %v2353 = vsel %vm660, %v2181, 0.0
    %v2354 = vrot.slane %v2353, 4
    %v2355 = vadd.f32 %v2353, %v2354
    %v2356 = vrot.slane %v2355, 2
    %v2357 = vadd.f32 %v2355, %v2356
    %v2358 = vrot.slane %v2357, 1
    %v2359 = vadd.f32 %v2357, %v2358
    %v2360 = vsel %vm660, %v2182, 0.0
    %v2361 = vrot.slane %v2360, 4
    %v2362 = vadd.f32 %v2360, %v2361
    %v2363 = vrot.slane %v2362, 2
    %v2364 = vadd.f32 %v2362, %v2363
    %v2365 = vrot.slane %v2364, 1
    %v2366 = vadd.f32 %v2364, %v2365
    %v2367 = vsel %vm660, %v2183, 0.0
    %v2368 = vrot.slane %v2367, 4
    %v2369 = vadd.f32 %v2367, %v2368
    %v2370 = vrot.slane %v2369, 2
    %v2371 = vadd.f32 %v2369, %v2370
    %v2372 = vrot.slane %v2371, 1
    %v2373 = vadd.f32 %v2371, %v2372
    %v2374 = vsel %vm660, %v2184, 0.0
    %v2375 = vrot.slane %v2374, 4
    %v2376 = vadd.f32 %v2374, %v2375
    %v2377 = vrot.slane %v2376, 2
    %v2378 = vadd.f32 %v2376, %v2377
    %v2379 = vrot.slane %v2378, 1
    %v2380 = vadd.f32 %v2378, %v2379
    %v2381 = vsel %vm660, %v2185, 0.0
    %v2382 = vrot.slane %v2381, 4
    %v2383 = vadd.f32 %v2381, %v2382
    %v2384 = vrot.slane %v2383, 2
    %v2385 = vadd.f32 %v2383, %v2384
    %v2386 = vrot.slane %v2385, 1
    %v2387 = vadd.f32 %v2385, %v2386
    %v2388 = vsub.f32 %v2338, %v2282
    %v2389 = vsub.f32 %v2345, %v2289
    %v2390 = vsub.f32 %v2352, %v2296
    %v2391 = vsub.f32 %v2359, %v2303
    %v2392 = vsub.f32 %v2366, %v2310
    %v2393 = vsub.f32 %v2373, %v2317
    %v2394 = vsub.f32 %v2380, %v2324
    %v2395 = vsub.f32 %v2387, %v2331
    %vm2404 = vcmask 1041409
    %v2405 = vsel %vm2404, %v2289, %v2282
    %vm2406 = vcmask 1042434
    %v2407 = vsel %vm2406, %v2296, %v2405
    %vm2408 = vcmask 1043459
    %v2409 = vsel %vm2408, %v2303, %v2407
    %vm2410 = vcmask 1044484
    %v2411 = vsel %vm2410, %v2310, %v2409
    %vm2412 = vcmask 1045509
    %v2413 = vsel %vm2412, %v2317, %v2411
    %vm2414 = vcmask 1046534
    %v2415 = vsel %vm2414, %v2324, %v2413
    %vm2416 = vcmask 1047559
    %v2417 = vsel %vm2416, %v2331, %v2415
    %v2427 = vsel %vm2404, %v2389, %v2388
    %v2428 = vsel %vm2406, %v2390, %v2427
    %v2429 = vsel %vm2408, %v2391, %v2428
    %v2430 = vsel %vm2410, %v2392, %v2429
    %v2431 = vsel %vm2412, %v2393, %v2430
    %v2432 = vsel %vm2414, %v2394, %v2431
    %v2433 = vsel %vm2416, %v2395, %v2432
    %v2435 = vsel %vm660, %v2417, 0.0
    %v2436 = vsel %vm660, %v2433, 0.0
    %v2437 = vld [vmem:[%s3] sm:$0xff]
    %2439 = vset.pattern.permute.xlu0 0
    %2440 = vperm.xlu0 %2439, %v2437
    %v2441 = vpop.permute.xlu0 %2440
    %v2443 = vperm.slane %v132, 3
    %v2444 = vmul.f32 %v2441, %v2443
    %v2445 = vperm.slane %v132, 4
    %v2446 = vadd.f32 %v2444, %v2445
    %2447 = vmatpush.msra.mxu0 %v103
    %2448 = vmatpush.msra.mxu0 %v102
    %2449 = vmatpush.msra.mxu0 %v101
    %2450 = vmatpush.msra.mxu0 %v100
    %2451 = vmatpush.msra.mxu0 %v99
    %2452 = vmatpush.msra.mxu0 %v98
    %2453 = vmatpush.msra.mxu0 %v97
    %2454 = vmatpush.msra.mxu0 %v96
    %2455 = vmatpush.msra.mxu0 %v95
    %2456 = vmatpush.msra.mxu0 %v94
    %2457 = vmatpush.msra.mxu0 %v93
    %2458 = vmatpush.msra.mxu0 %v92
    %2459 = vmatpush.msra.mxu0 %v91
    %2460 = vmatpush.msra.mxu0 %v90
    %2461 = vmatpush.msra.mxu0 %v89
    %2462 = vmatpush.msra.mxu0 %v88
    %2463 = vmatmul.f32.gmra.mxu0 %v2435
    %v2464 = vpop.f32.mrf.mxu0
    %v2465 = vadd.f32 0.0, %v2464
    %2466 = vdwg.mxu0
    %2467 = vmatpush.msra.mxu0 %v119
    %2468 = vmatpush.msra.mxu0 %v118
    %2469 = vmatpush.msra.mxu0 %v117
    %2470 = vmatpush.msra.mxu0 %v116
    %2471 = vmatpush.msra.mxu0 %v115
    %2472 = vmatpush.msra.mxu0 %v114
    %2473 = vmatpush.msra.mxu0 %v113
    %2474 = vmatpush.msra.mxu0 %v112
    %2475 = vmatpush.msra.mxu0 %v111
    %2476 = vmatpush.msra.mxu0 %v110
    %2477 = vmatpush.msra.mxu0 %v109
    %2478 = vmatpush.msra.mxu0 %v108
    %2479 = vmatpush.msra.mxu0 %v107
    %2480 = vmatpush.msra.mxu0 %v106
    %2481 = vmatpush.msra.mxu0 %v105
    %2482 = vmatpush.msra.mxu0 %v104
    %2483 = vmatmul.f32.gmra.mxu0 %v2436
    %v2484 = vpop.f32.mrf.mxu0
    %v2485 = vadd.f32 %v2465, %v2484
    %2486 = vdwg.mxu0
    %v2487 = vadd.f32 %v2446, %v2485
    %vm2488 = vcmp.gt.f32.partialorder %v2487, 0.0
    %v2489 = vmul.f32 %v2487, 0.01
    %v2490 = vsel %vm2488, %v2487, %v2489
    %v2491 = vperm.slane %v132, 5
    %v2493 = vsel %vm660, %v2490, 0
    %2495 = vmatpush.msra.mxu0 0.0
    %2496 = vmatpush.msra.mxu0 0.0
    %2497 = vmatpush.msra.mxu0 0.0
    %2498 = vmatpush.msra.mxu0 0.0
    %2499 = vmatpush.msra.mxu0 %v131
    %2500 = vmatpush.msra.mxu0 %v130
    %2501 = vmatpush.msra.mxu0 %v129
    %2502 = vmatpush.msra.mxu0 %v128
    %2503 = vmatpush.msra.mxu0 %v127
    %2504 = vmatpush.msra.mxu0 %v126
    %2505 = vmatpush.msra.mxu0 %v125
    %2506 = vmatpush.msra.mxu0 %v124
    %2507 = vmatpush.msra.mxu0 %v123
    %2508 = vmatpush.msra.mxu0 %v122
    %2509 = vmatpush.msra.mxu0 %v121
    %2510 = vmatpush.msra.mxu0 %v120
    %2511 = vmatmul.f32.gmra.mxu0 %v2493
    %v2512 = vpop.f32.mrf.mxu0
    %v2513 = vadd.f32 %v2491, %v2512
    %2514 = vdwg.mxu0
    %2515 = vadd.xlane.f32.xlu0 %v2513
    %v2516 = vpop.xlane.xlu0 %2515
    %v2517 = vrcp.pop 128.0
    %v2518 = vmul.f32 128.0, %v2517
    %v2519 = vsub.f32 1.0, %v2518
    %v2520 = vmul.f32 %v2517, %v2519
    %v2521 = vadd.f32 %v2517, %v2520
    %vm2522 = vweird.f32 %v2517
    %v2523 = vsel %vm2522, %v2517, %v2521
    %v2524 = vmul.f32 %v2516, %v2523
    %v2525 = vmul.f32 %v2513, %v2513
    %2526 = vadd.xlane.f32.xlu0 %v2525
    %v2527 = vpop.xlane.xlu0 %2526
    %v2528 = vmul.f32 %v2527, %v2523
    %v2529 = vmul.f32 %v2524, %v2524
    %v2530 = vsub.f32 %v2528, %v2529
    %v2531 = vmax.f32 %v2530, 0.0
    %v2532 = vsub.f32 %v2513, %v2524
    %v2533 = vadd.f32 %v2531, 1e-05
    %v2534 = vrsqrt.pop %v2533
    %v2535 = vmul.f32 %v2534, %v2533
    %v2536 = vmul.f32 %v2535, %v2534
    %v2537 = vmul.f32 0.5, %v2536
    %v2538 = vsub.f32 1.5, %v2537
    %v2539 = vmul.f32 %v2534, %v2538
    %vm2540 = vweird.f32 %v2533
    %vm2541 = vweird.f32 %v2534
    %vm2542 = vmor %vm2540, %vm2541
    %v2543 = vsel %vm2542, %v2534, %v2539
    %v2544 = vmul.f32 %v2532, %v2543
    %v2545 = vperm.slane %v132, 6
    %v2546 = vmul.f32 %v2544, %v2545
    %v2547 = vperm.slane %v132, 7
    %v2548 = vadd.f32 %v2546, %v2547
    %vm2549 = vcmp.gt.f32.partialorder %v2548, 0.0
    %v2550 = vmul.f32 %v2548, 0.01
    %v2551 = vsel %vm2549, %v2548, %v2550
    %2552 = vst [vmem:[#allocation10] sm:$0xff] %v2551
    // Predicated region
    $region42: #{tpu_custom_call.1} parent=1 // pred_check
      _
    $region43: #{tpu_custom_call.1} parent=1 // pred_check_branch
      %2554 = sbr.rel (0) target = $region45
    $region44: #{tpu_custom_call.1} parent=1 // pred_region
      %2556 = vsyncadd [#allocation4], 0
      %s2558 = sshll.u32 [#allocation10], 4
      %s2559 = int_to_ptr.vmem [resolvable:$true] %s2558
      %s2560 = sshll.u32 %s6, 4
      %s2561 = int_to_ptr.hbm [resolvable:$true] %s2560
      %2563 = dma.vmem_to_hbm [thread:$0]  %s2559, 128, %s2561, [#allocation4]
    $region45: #{tpu_custom_call.1} parent=1 // pred_fallthru
      _
    // Predicated region
    $region46: #{tpu_custom_call.1} parent=1 // pred_check
      _
    $region47: #{tpu_custom_call.1} parent=1 // pred_check_branch
      %2565 = sbr.rel (0) target = $region49
    $region48: #{tpu_custom_call.1} parent=1 // pred_region
      %2567 = dma.done [#allocation4], 128
    $region49: #{tpu_custom_call.1} parent=1 // pred_fallthru
      _
    %2568 = vsyncpa [#allocation3], 1
    %2569 = vsyncpa [#allocation6], 1
    %2570 = vsyncpa [#allocation9], 1
    %2571 = vsyncpa [#allocation4], 1

</llo_original>
